<compile_context>
chip_gen: v5e
topology: v5e:2x2
jax: 0.10.0
libtpu: 0.0.40
codegen_flags: <defaults>
</compile_context>

<pallas_src>
import functools

import jax
import jax.numpy as jnp
from jax.experimental import pallas as pl
from jax.experimental.pallas import tpu as pltpu

BN_EPS = 1e-5
LEAKY_SLOPE = 0.01   # torch.nn.LeakyReLU default
LANE = 128


def _leaky_relu(x):
    # mul + max (2 VALU ops) instead of cmp + select.
    return jnp.maximum(x, LEAKY_SLOPE * x)


def _bn_leaky_fused(x, gamma, beta):
    """Training-mode BatchNorm1d (biased variance) + LeakyReLU.

    Centered variance (robust against mean >> std cancellation); gamma*inv and
    beta - mean*gamma*inv are folded into a per-column scale/shift so the
    per-element normalize cost is a single FMA. All math in f32.
    """
    inv_n = 1.0 / x.shape[0]
    mean = jnp.sum(x, axis=0, keepdims=True) * inv_n
    xc = x - mean
    var = jnp.sum(xc * xc, axis=0, keepdims=True) * inv_n
    inv = jax.lax.rsqrt(var + BN_EPS)          # EUP slot
    scale = gamma * inv
    shift = beta - mean * scale
    return _leaky_relu(x * scale + shift)


def gin_fused_kernel(adj_ref, h0_ref, w1_ref, g1_ref, b1_ref,
                     w2_ref, g2_ref, b2_ref, out_ref, *, num_layers, d_pad):
    mxu_dtype = adj_ref.dtype
    h = h0_ref[...]                  # f32 (N, Dp); stays f32 for the VPU math
    out_ref[:, 0:d_pad] = h          # h0 slice of the concatenated output
    adj = adj_ref[...]               # (N, N), self-loop already folded (A + I)

    # layer_num is small and static -> fully unrolled; h lives in vregs/VMEM
    # and never round-trips HBM between layers.
    for layer in range(num_layers):
        # GIN aggregation: (A + I) @ h  (eps = 0 folded into the adjacency).
        agg = jnp.dot(adj, h.astype(mxu_dtype),
                      preferred_element_type=jnp.float32)
        # MLP: Linear -> BN -> LeakyReLU -> Linear
        z = jnp.dot(agg.astype(mxu_dtype), w1_ref[layer],
                    preferred_element_type=jnp.float32)
        z = _bn_leaky_fused(z, g1_ref[layer], b1_ref[layer])
        h = jnp.dot(z.astype(mxu_dtype), w2_ref[layer],
                    preferred_element_type=jnp.float32)
        # outer BatchNorm + outer LeakyReLU
        h = _bn_leaky_fused(h, g2_ref[layer], b2_ref[layer])
        lo = (layer + 1) * d_pad
        out_ref[:, lo:lo + d_pad] = h   # 128-lane-aligned (unmasked) store


def pack_gin_inputs(adj, h, params, mxu_dtype=jnp.bfloat16):
    """One-time packing hoisted out of the per-step path.

    Folds the self-loop into the adjacency, zero-pads feature dims to 128
    lanes, stacks per-layer params into single refs, and casts MXU operands.
    Zero-padded weight rows/cols + zero-padded gamma/beta keep padded columns
    identically zero through every layer.
    """
    N, D = h.shape
    Dp = max(LANE, ((D + LANE - 1) // LANE) * LANE)
    pw = Dp - D

    adj_sl = (adj.astype(jnp.float32)
              + jnp.eye(N, dtype=jnp.float32)).astype(mxu_dtype)
    w1 = jnp.pad(jnp.stack([p["w1"] for p in params]),
                 ((0, 0), (0, pw), (0, pw))).astype(mxu_dtype)
    w2 = jnp.pad(jnp.stack([p["w2"] for p in params]),
                 ((0, 0), (0, pw), (0, pw))).astype(mxu_dtype)
    g1 = jnp.pad(jnp.stack([p["g1"] for p in params]), ((0, 0), (0, 0), (0, pw)))
    b1 = jnp.pad(jnp.stack([p["b1"] for p in params]), ((0, 0), (0, 0), (0, pw)))
    g2 = jnp.pad(jnp.stack([p["g2"] for p in params]), ((0, 0), (0, 0), (0, pw)))
    b2 = jnp.pad(jnp.stack([p["b2"] for p in params]), ((0, 0), (0, 0), (0, pw)))
    h0 = jnp.pad(h, ((0, 0), (0, pw))).astype(jnp.float32)
    return adj_sl, h0, w1, g1, b1, w2, g2, b2


@functools.partial(jax.jit, static_argnames=("d_orig", "strip_padding"))
def gin_forward_packed(adj_sl, h0, w1, g1, b1, w2, g2, b2, *,
                       d_orig, strip_padding=True):
    """Fused GIN forward on pre-packed inputs (see pack_gin_inputs)."""
    N, Dp = h0.shape
    L = w1.shape[0]
    itemsize = jnp.dtype(adj_sl.dtype).itemsize

    flops = 2 * L * N * (N * Dp + 2 * Dp * Dp)
    bytes_accessed = (N * N * itemsize              # adjacency (self-loop folded)
                      + N * Dp * 4                  # h0
                      + 2 * L * Dp * Dp * itemsize  # w1, w2
                      + 4 * L * Dp * 4              # g1, b1, g2, b2
                      + N * (L + 1) * Dp * 4)       # wide output
    cost = pl.CostEstimate(flops=flops,
                           transcendentals=2 * L * Dp,   # rsqrt per BN column
                           bytes_accessed=bytes_accessed)

    # Everything is VMEM-resident at once; size the scoped limit from the real
    # footprint (default scoped VMEM is only 16/32 MiB) with 2x + 8 MiB slack
    # for temporaries, capped at 64 MiB to stay safe on v7x.
    vmem_limit = int(min(64 * 1024 * 1024, 2 * bytes_accessed + (8 << 20)))

    kernel = functools.partial(gin_fused_kernel, num_layers=L, d_pad=Dp)
    vmem = pl.BlockSpec(memory_space=pltpu.MemorySpace.VMEM)
    out_pad = pl.pallas_call(
        kernel,
        out_shape=jax.ShapeDtypeStruct((N, (L + 1) * Dp), jnp.float32),
        in_specs=[vmem] * 8,
        out_specs=vmem,
        compiler_params=pltpu.CompilerParams(vmem_limit_bytes=vmem_limit),
        cost_estimate=cost,
    )(adj_sl, h0, w1, g1, b1, w2, g2, b2)

    if (not strip_padding) or Dp == d_orig:
        return out_pad
    # strip the feature padding: (N, (L+1)*Dp) -> (N, (L+1)*D)
    return out_pad.reshape(N, L + 1, Dp)[:, :, :d_orig].reshape(N, (L + 1) * d_orig)


# ----------------------------- pure-JAX reference -----------------------------

def _batch_norm_ref(x, gamma, beta):
    mean = jnp.mean(x, axis=0, keepdims=True)
    var = jnp.mean((x - mean) * (x - mean), axis=0, keepdims=True)
    return (x - mean) * jax.lax.rsqrt(var + BN_EPS) * gamma + beta


def _leaky_ref(x):
    return jnp.where(x > 0, x, LEAKY_SLOPE * x)


def gin_forward_ref(adj, h, params, mxu_dtype=jnp.float32):
    """Pure-JAX reference with PyTorch semantics; mirrors the kernel's
    self-loop fold and MXU operand casting so tolerances stay tight."""
    N = adj.shape[0]
    dot = functools.partial(jnp.dot, preferred_element_type=jnp.float32,
                            precision=jax.lax.Precision.HIGHEST)
    adj_m = (adj.astype(jnp.float32) + jnp.eye(N, dtype=jnp.float32)).astype(mxu_dtype)
    hs = [h]
    for p in params:
        agg = dot(adj_m, h.astype(mxu_dtype))
        z = dot(agg.astype(mxu_dtype), p["w1"].astype(mxu_dtype))
        z = _leaky_ref(_batch_norm_ref(z, p["g1"], p["b1"]))
        h = dot(z.astype(mxu_dtype), p["w2"].astype(mxu_dtype))
        h = _leaky_ref(_batch_norm_ref(h, p["g2"], p["b2"]))
        hs.append(h)
    return jnp.concatenate(hs, axis=-1)


def init_params(key, in_dim, layer_num):
    params = []
    for _ in range(layer_num):
        key, k1, k2, k3, k4, k5, k6 = jax.random.split(key, 7)
        # PyTorch Linear stores weight [out, in]; we pass the transpose [in, out]
        params.append(dict(
            w1=jax.random.normal(k1, (in_dim, in_dim), jnp.float32) * 0.1,
            g1=1.0 + 0.05 * jax.random.normal(k2, (1, in_dim), jnp.float32),
            b1=0.05 * jax.random.normal(k3, (1, in_dim), jnp.float32),
            w2=jax.random.normal(k4, (in_dim, in_dim), jnp.float32) * 0.1,
            g2=1.0 + 0.05 * jax.random.normal(k5, (1, in_dim), jnp.float32),
            b2=0.05 * jax.random.normal(k6, (1, in_dim), jnp.float32),
        ))
    return params


if __name__ == "__main__":
    key = jax.random.PRNGKey(0)
    N = 64        # number of graph nodes
    in_dim = 32   # feature dim
    layer_num = 4

    k_adj, k_h, k_p = jax.random.split(key, 3)

    # deterministic sparse-ish random graph, dense adjacency A[i, j] = edge j -> i
    adj = (jax.random.uniform(k_adj, (N, N)) < 0.1).astype(jnp.float32)
    # no self loops in the adjacency (GIN adds the self term via (1+eps)*h)
    adj = adj * (1.0 - jnp.eye(N, dtype=jnp.float32))

    h = jax.random.normal(k_h, (N, in_dim), jnp.float32)
    params = init_params(k_p, in_dim, layer_num)

    # --- f32 MXU-operand path: tight check against the exact reference -------
    packed_f32 = pack_gin_inputs(adj, h, params, mxu_dtype=jnp.float32)
    out_f32 = jax.block_until_ready(gin_forward_packed(*packed_f32, d_orig=in_dim))
    ref_f32 = gin_forward_ref(adj, h, params, mxu_dtype=jnp.float32)
    assert out_f32.shape == (N, in_dim * (layer_num + 1)), out_f32.shape
    assert jnp.allclose(out_f32, ref_f32, atol=5e-4, rtol=5e-4), \
        float(jnp.max(jnp.abs(out_f32 - ref_f32)))

    # --- default bf16 MXU-operand path (recommended on v6e/v7x) --------------
    packed_bf16 = pack_gin_inputs(adj, h, params)    # mxu_dtype defaults to bf16
    out_bf16 = jax.block_until_ready(gin_forward_packed(*packed_bf16, d_orig=in_dim))
    ref_bf16 = gin_forward_ref(adj, h, params, mxu_dtype=jnp.bfloat16)
    assert out_bf16.shape == (N, in_dim * (layer_num + 1)), out_bf16.shape
    assert jnp.allclose(out_bf16, ref_bf16, atol=2e-2, rtol=2e-2), \
        float(jnp.max(jnp.abs(out_bf16 - ref_bf16)))

    print("KERNEL_OK")
</pallas_src>

<mosaic_0001>
module attributes {stable_mosaic.version = 11 : i64} {
  func.func @gin_fused_kernel(%arg0: memref<64x64xf32, #tpu.memory_space<vmem>>, %arg1: memref<64x128xf32, #tpu.memory_space<vmem>>, %arg2: memref<4x128x128xf32, #tpu.memory_space<vmem>>, %arg3: memref<4x1x128xf32, #tpu.memory_space<vmem>>, %arg4: memref<4x1x128xf32, #tpu.memory_space<vmem>>, %arg5: memref<4x128x128xf32, #tpu.memory_space<vmem>>, %arg6: memref<4x1x128xf32, #tpu.memory_space<vmem>>, %arg7: memref<4x1x128xf32, #tpu.memory_space<vmem>>, %arg8: memref<64x640xf32, #tpu.memory_space<vmem>>) attributes {dimension_semantics = [], scalar_prefetch = 0 : i64, scratch_operands = 0 : i64, tpu.core_type = #tpu.core_type<tc>} {
    %c0 = arith.constant 0 : index
    %c0_0 = arith.constant 0 : index
    %0 = vector.load %arg1[%c0, %c0_0] : memref<64x128xf32, #tpu.memory_space<vmem>>, vector<64x128xf32>
    %c0_1 = arith.constant 0 : index
    %c0_2 = arith.constant 0 : index
    %1 = vector.load %arg8[%c0_1, %c0_2] : memref<64x640xf32, #tpu.memory_space<vmem>>, vector<64x128xf32>
    tpu.vector_store %arg8[%c0_1, %c0_2], %0 {strides = array<i32>} : memref<64x640xf32, #tpu.memory_space<vmem>>, vector<64x128xf32>,
    %c0_3 = arith.constant 0 : index
    %c0_4 = arith.constant 0 : index
    %2 = vector.load %arg0[%c0_3, %c0_4] : memref<64x64xf32, #tpu.memory_space<vmem>>, vector<64x64xf32>
    %cst = arith.constant dense<0.000000e+00> : vector<64x128xf32>
    %3 = tpu.matmul %2, %0, %cst {dimension_numbers = #tpu.dot_dimension_numbers<[1], [0], [0], [1], [0, 0, 1, 1], [], []>} : vector<64x64xf32>, vector<64x128xf32>, vector<64x128xf32> -> vector<64x128xf32>
    %c0_5 = arith.constant 0 : index
    %c0_6 = arith.constant 0 : index
    %c0_7 = arith.constant 0 : index
    %4 = vector.load %arg2[%c0_5, %c0_6, %c0_7] : memref<4x128x128xf32, #tpu.memory_space<vmem>>, vector<1x128x128xf32>
    %5 = vector.shape_cast %4 : vector<1x128x128xf32> to vector<128x128xf32>
    %cst_8 = arith.constant dense<0.000000e+00> : vector<64x128xf32>
    %6 = tpu.matmul %3, %5, %cst_8 {dimension_numbers = #tpu.dot_dimension_numbers<[1], [0], [0], [1], [0, 0, 1, 1], [], []>} : vector<64x128xf32>, vector<128x128xf32>, vector<64x128xf32> -> vector<64x128xf32>
    %c0_9 = arith.constant 0 : index
    %c0_10 = arith.constant 0 : index
    %c0_11 = arith.constant 0 : index
    %7 = vector.load %arg3[%c0_9, %c0_10, %c0_11] : memref<4x1x128xf32, #tpu.memory_space<vmem>>, vector<1x1x128xf32>
    %8 = vector.shape_cast %7 : vector<1x1x128xf32> to vector<1x128xf32>
    %c0_12 = arith.constant 0 : index
    %c0_13 = arith.constant 0 : index
    %c0_14 = arith.constant 0 : index
    %9 = vector.load %arg4[%c0_12, %c0_13, %c0_14] : memref<4x1x128xf32, #tpu.memory_space<vmem>>, vector<1x1x128xf32>
    %10 = vector.shape_cast %9 : vector<1x1x128xf32> to vector<1x128xf32>
    %cst_15 = arith.constant dense<0.000000e+00> : vector<128xf32>
    %11 = vector.multi_reduction <add>, %6, %cst_15 [0] : vector<64x128xf32> to vector<128xf32>
    %12 = vector.shape_cast %11 : vector<128xf32> to vector<1x128xf32>
    %cst_16 = arith.constant 1.562500e-02 : f32
    %13 = vector.broadcast %cst_16 : f32 to vector<1x128xf32>
    %14 = arith.mulf %12, %13 : vector<1x128xf32>
    %15 = vector.broadcast %14 : vector<1x128xf32> to vector<64x128xf32>
    %16 = arith.subf %6, %15 : vector<64x128xf32>
    %17 = arith.mulf %16, %16 : vector<64x128xf32>
    %cst_17 = arith.constant dense<0.000000e+00> : vector<128xf32>
    %18 = vector.multi_reduction <add>, %17, %cst_17 [0] : vector<64x128xf32> to vector<128xf32>
    %19 = vector.shape_cast %18 : vector<128xf32> to vector<1x128xf32>
    %cst_18 = arith.constant 1.562500e-02 : f32
    %20 = vector.broadcast %cst_18 : f32 to vector<1x128xf32>
    %21 = arith.mulf %19, %20 : vector<1x128xf32>
    %cst_19 = arith.constant 9.99999974E-6 : f32
    %22 = vector.broadcast %cst_19 : f32 to vector<1x128xf32>
    %23 = arith.addf %21, %22 : vector<1x128xf32>
    %24 = math.rsqrt %23 : vector<1x128xf32>
    %25 = arith.mulf %8, %24 : vector<1x128xf32>
    %26 = arith.mulf %14, %25 : vector<1x128xf32>
    %27 = arith.subf %10, %26 : vector<1x128xf32>
    %28 = vector.broadcast %25 : vector<1x128xf32> to vector<64x128xf32>
    %29 = arith.mulf %6, %28 : vector<64x128xf32>
    %30 = vector.broadcast %27 : vector<1x128xf32> to vector<64x128xf32>
    %31 = arith.addf %29, %30 : vector<64x128xf32>
    %cst_20 = arith.constant 0.00999999977 : f32
    %32 = vector.broadcast %cst_20 : f32 to vector<64x128xf32>
    %33 = arith.mulf %32, %31 : vector<64x128xf32>
    %34 = arith.maximumf %31, %33 : vector<64x128xf32>
    %c0_21 = arith.constant 0 : index
    %c0_22 = arith.constant 0 : index
    %c0_23 = arith.constant 0 : index
    %35 = vector.load %arg5[%c0_21, %c0_22, %c0_23] : memref<4x128x128xf32, #tpu.memory_space<vmem>>, vector<1x128x128xf32>
    %36 = vector.shape_cast %35 : vector<1x128x128xf32> to vector<128x128xf32>
    %cst_24 = arith.constant dense<0.000000e+00> : vector<64x128xf32>
    %37 = tpu.matmul %34, %36, %cst_24 {dimension_numbers = #tpu.dot_dimension_numbers<[1], [0], [0], [1], [0, 0, 1, 1], [], []>} : vector<64x128xf32>, vector<128x128xf32>, vector<64x128xf32> -> vector<64x128xf32>
    %c0_25 = arith.constant 0 : index
    %c0_26 = arith.constant 0 : index
    %c0_27 = arith.constant 0 : index
    %38 = vector.load %arg6[%c0_25, %c0_26, %c0_27] : memref<4x1x128xf32, #tpu.memory_space<vmem>>, vector<1x1x128xf32>
    %39 = vector.shape_cast %38 : vector<1x1x128xf32> to vector<1x128xf32>
    %c0_28 = arith.constant 0 : index
    %c0_29 = arith.constant 0 : index
    %c0_30 = arith.constant 0 : index
    %40 = vector.load %arg7[%c0_28, %c0_29, %c0_30] : memref<4x1x128xf32, #tpu.memory_space<vmem>>, vector<1x1x128xf32>
    %41 = vector.shape_cast %40 : vector<1x1x128xf32> to vector<1x128xf32>
    %cst_31 = arith.constant dense<0.000000e+00> : vector<128xf32>
    %42 = vector.multi_reduction <add>, %37, %cst_31 [0] : vector<64x128xf32> to vector<128xf32>
    %43 = vector.shape_cast %42 : vector<128xf32> to vector<1x128xf32>
    %cst_32 = arith.constant 1.562500e-02 : f32
    %44 = vector.broadcast %cst_32 : f32 to vector<1x128xf32>
    %45 = arith.mulf %43, %44 : vector<1x128xf32>
    %46 = vector.broadcast %45 : vector<1x128xf32> to vector<64x128xf32>
    %47 = arith.subf %37, %46 : vector<64x128xf32>
    %48 = arith.mulf %47, %47 : vector<64x128xf32>
    %cst_33 = arith.constant dense<0.000000e+00> : vector<128xf32>
    %49 = vector.multi_reduction <add>, %48, %cst_33 [0] : vector<64x128xf32> to vector<128xf32>
    %50 = vector.shape_cast %49 : vector<128xf32> to vector<1x128xf32>
    %cst_34 = arith.constant 1.562500e-02 : f32
    %51 = vector.broadcast %cst_34 : f32 to vector<1x128xf32>
    %52 = arith.mulf %50, %51 : vector<1x128xf32>
    %cst_35 = arith.constant 9.99999974E-6 : f32
    %53 = vector.broadcast %cst_35 : f32 to vector<1x128xf32>
    %54 = arith.addf %52, %53 : vector<1x128xf32>
    %55 = math.rsqrt %54 : vector<1x128xf32>
    %56 = arith.mulf %39, %55 : vector<1x128xf32>
    %57 = arith.mulf %45, %56 : vector<1x128xf32>
    %58 = arith.subf %41, %57 : vector<1x128xf32>
    %59 = vector.broadcast %56 : vector<1x128xf32> to vector<64x128xf32>
    %60 = arith.mulf %37, %59 : vector<64x128xf32>
    %61 = vector.broadcast %58 : vector<1x128xf32> to vector<64x128xf32>
    %62 = arith.addf %60, %61 : vector<64x128xf32>
    %cst_36 = arith.constant 0.00999999977 : f32
    %63 = vector.broadcast %cst_36 : f32 to vector<64x128xf32>
    %64 = arith.mulf %63, %62 : vector<64x128xf32>
    %65 = arith.maximumf %62, %64 : vector<64x128xf32>
    %c0_37 = arith.constant 0 : index
    %c128 = arith.constant 128 : index
    %66 = vector.load %arg8[%c0_37, %c128] : memref<64x640xf32, #tpu.memory_space<vmem>>, vector<64x128xf32>
    tpu.vector_store %arg8[%c0_37, %c128], %65 {strides = array<i32>} : memref<64x640xf32, #tpu.memory_space<vmem>>, vector<64x128xf32>,
    %cst_38 = arith.constant dense<0.000000e+00> : vector<64x128xf32>
    %67 = tpu.matmul %2, %65, %cst_38 {dimension_numbers = #tpu.dot_dimension_numbers<[1], [0], [0], [1], [0, 0, 1, 1], [], []>} : vector<64x64xf32>, vector<64x128xf32>, vector<64x128xf32> -> vector<64x128xf32>
    %c1 = arith.constant 1 : index
    %c0_39 = arith.constant 0 : index
    %c0_40 = arith.constant 0 : index
    %68 = vector.load %arg2[%c1, %c0_39, %c0_40] : memref<4x128x128xf32, #tpu.memory_space<vmem>>, vector<1x128x128xf32>
    %69 = vector.shape_cast %68 : vector<1x128x128xf32> to vector<128x128xf32>
    %cst_41 = arith.constant dense<0.000000e+00> : vector<64x128xf32>
    %70 = tpu.matmul %67, %69, %cst_41 {dimension_numbers = #tpu.dot_dimension_numbers<[1], [0], [0], [1], [0, 0, 1, 1], [], []>} : vector<64x128xf32>, vector<128x128xf32>, vector<64x128xf32> -> vector<64x128xf32>
    %c1_42 = arith.constant 1 : index
    %c0_43 = arith.constant 0 : index
    %c0_44 = arith.constant 0 : index
    %71 = vector.load %arg3[%c1_42, %c0_43, %c0_44] : memref<4x1x128xf32, #tpu.memory_space<vmem>>, vector<1x1x128xf32>
    %72 = vector.shape_cast %71 : vector<1x1x128xf32> to vector<1x128xf32>
    %c1_45 = arith.constant 1 : index
    %c0_46 = arith.constant 0 : index
    %c0_47 = arith.constant 0 : index
    %73 = vector.load %arg4[%c1_45, %c0_46, %c0_47] : memref<4x1x128xf32, #tpu.memory_space<vmem>>, vector<1x1x128xf32>
    %74 = vector.shape_cast %73 : vector<1x1x128xf32> to vector<1x128xf32>
    %cst_48 = arith.constant dense<0.000000e+00> : vector<128xf32>
    %75 = vector.multi_reduction <add>, %70, %cst_48 [0] : vector<64x128xf32> to vector<128xf32>
    %76 = vector.shape_cast %75 : vector<128xf32> to vector<1x128xf32>
    %cst_49 = arith.constant 1.562500e-02 : f32
    %77 = vector.broadcast %cst_49 : f32 to vector<1x128xf32>
    %78 = arith.mulf %76, %77 : vector<1x128xf32>
    %79 = vector.broadcast %78 : vector<1x128xf32> to vector<64x128xf32>
    %80 = arith.subf %70, %79 : vector<64x128xf32>
    %81 = arith.mulf %80, %80 : vector<64x128xf32>
    %cst_50 = arith.constant dense<0.000000e+00> : vector<128xf32>
    %82 = vector.multi_reduction <add>, %81, %cst_50 [0] : vector<64x128xf32> to vector<128xf32>
    %83 = vector.shape_cast %82 : vector<128xf32> to vector<1x128xf32>
    %cst_51 = arith.constant 1.562500e-02 : f32
    %84 = vector.broadcast %cst_51 : f32 to vector<1x128xf32>
    %85 = arith.mulf %83, %84 : vector<1x128xf32>
    %cst_52 = arith.constant 9.99999974E-6 : f32
    %86 = vector.broadcast %cst_52 : f32 to vector<1x128xf32>
    %87 = arith.addf %85, %86 : vector<1x128xf32>
    %88 = math.rsqrt %87 : vector<1x128xf32>
    %89 = arith.mulf %72, %88 : vector<1x128xf32>
    %90 = arith.mulf %78, %89 : vector<1x128xf32>
    %91 = arith.subf %74, %90 : vector<1x128xf32>
    %92 = vector.broadcast %89 : vector<1x128xf32> to vector<64x128xf32>
    %93 = arith.mulf %70, %92 : vector<64x128xf32>
    %94 = vector.broadcast %91 : vector<1x128xf32> to vector<64x128xf32>
    %95 = arith.addf %93, %94 : vector<64x128xf32>
    %cst_53 = arith.constant 0.00999999977 : f32
    %96 = vector.broadcast %cst_53 : f32 to vector<64x128xf32>
    %97 = arith.mulf %96, %95 : vector<64x128xf32>
    %98 = arith.maximumf %95, %97 : vector<64x128xf32>
    %c1_54 = arith.constant 1 : index
    %c0_55 = arith.constant 0 : index
    %c0_56 = arith.constant 0 : index
    %99 = vector.load %arg5[%c1_54, %c0_55, %c0_56] : memref<4x128x128xf32, #tpu.memory_space<vmem>>, vector<1x128x128xf32>
    %100 = vector.shape_cast %99 : vector<1x128x128xf32> to vector<128x128xf32>
    %cst_57 = arith.constant dense<0.000000e+00> : vector<64x128xf32>
    %101 = tpu.matmul %98, %100, %cst_57 {dimension_numbers = #tpu.dot_dimension_numbers<[1], [0], [0], [1], [0, 0, 1, 1], [], []>} : vector<64x128xf32>, vector<128x128xf32>, vector<64x128xf32> -> vector<64x128xf32>
    %c1_58 = arith.constant 1 : index
    %c0_59 = arith.constant 0 : index
    %c0_60 = arith.constant 0 : index
    %102 = vector.load %arg6[%c1_58, %c0_59, %c0_60] : memref<4x1x128xf32, #tpu.memory_space<vmem>>, vector<1x1x128xf32>
    %103 = vector.shape_cast %102 : vector<1x1x128xf32> to vector<1x128xf32>
    %c1_61 = arith.constant 1 : index
    %c0_62 = arith.constant 0 : index
    %c0_63 = arith.constant 0 : index
    %104 = vector.load %arg7[%c1_61, %c0_62, %c0_63] : memref<4x1x128xf32, #tpu.memory_space<vmem>>, vector<1x1x128xf32>
    %105 = vector.shape_cast %104 : vector<1x1x128xf32> to vector<1x128xf32>
    %cst_64 = arith.constant dense<0.000000e+00> : vector<128xf32>
    %106 = vector.multi_reduction <add>, %101, %cst_64 [0] : vector<64x128xf32> to vector<128xf32>
    %107 = vector.shape_cast %106 : vector<128xf32> to vector<1x128xf32>
    %cst_65 = arith.constant 1.562500e-02 : f32
    %108 = vector.broadcast %cst_65 : f32 to vector<1x128xf32>
    %109 = arith.mulf %107, %108 : vector<1x128xf32>
    %110 = vector.broadcast %109 : vector<1x128xf32> to vector<64x128xf32>
    %111 = arith.subf %101, %110 : vector<64x128xf32>
    %112 = arith.mulf %111, %111 : vector<64x128xf32>
    %cst_66 = arith.constant dense<0.000000e+00> : vector<128xf32>
    %113 = vector.multi_reduction <add>, %112, %cst_66 [0] : vector<64x128xf32> to vector<128xf32>
    %114 = vector.shape_cast %113 : vector<128xf32> to vector<1x128xf32>
    %cst_67 = arith.constant 1.562500e-02 : f32
    %115 = vector.broadcast %cst_67 : f32 to vector<1x128xf32>
    %116 = arith.mulf %114, %115 : vector<1x128xf32>
    %cst_68 = arith.constant 9.99999974E-6 : f32
    %117 = vector.broadcast %cst_68 : f32 to vector<1x128xf32>
    %118 = arith.addf %116, %117 : vector<1x128xf32>
    %119 = math.rsqrt %118 : vector<1x128xf32>
    %120 = arith.mulf %103, %119 : vector<1x128xf32>
    %121 = arith.mulf %109, %120 : vector<1x128xf32>
    %122 = arith.subf %105, %121 : vector<1x128xf32>
    %123 = vector.broadcast %120 : vector<1x128xf32> to vector<64x128xf32>
    %124 = arith.mulf %101, %123 : vector<64x128xf32>
    %125 = vector.broadcast %122 : vector<1x128xf32> to vector<64x128xf32>
    %126 = arith.addf %124, %125 : vector<64x128xf32>
    %cst_69 = arith.constant 0.00999999977 : f32
    %127 = vector.broadcast %cst_69 : f32 to vector<64x128xf32>
    %128 = arith.mulf %127, %126 : vector<64x128xf32>
    %129 = arith.maximumf %126, %128 : vector<64x128xf32>
    %c0_70 = arith.constant 0 : index
    %c256 = arith.constant 256 : index
    %130 = vector.load %arg8[%c0_70, %c256] : memref<64x640xf32, #tpu.memory_space<vmem>>, vector<64x128xf32>
    tpu.vector_store %arg8[%c0_70, %c256], %129 {strides = array<i32>} : memref<64x640xf32, #tpu.memory_space<vmem>>, vector<64x128xf32>,
    %cst_71 = arith.constant dense<0.000000e+00> : vector<64x128xf32>
    %131 = tpu.matmul %2, %129, %cst_71 {dimension_numbers = #tpu.dot_dimension_numbers<[1], [0], [0], [1], [0, 0, 1, 1], [], []>} : vector<64x64xf32>, vector<64x128xf32>, vector<64x128xf32> -> vector<64x128xf32>
    %c2 = arith.constant 2 : index
    %c0_72 = arith.constant 0 : index
    %c0_73 = arith.constant 0 : index
    %132 = vector.load %arg2[%c2, %c0_72, %c0_73] : memref<4x128x128xf32, #tpu.memory_space<vmem>>, vector<1x128x128xf32>
    %133 = vector.shape_cast %132 : vector<1x128x128xf32> to vector<128x128xf32>
    %cst_74 = arith.constant dense<0.000000e+00> : vector<64x128xf32>
    %134 = tpu.matmul %131, %133, %cst_74 {dimension_numbers = #tpu.dot_dimension_numbers<[1], [0], [0], [1], [0, 0, 1, 1], [], []>} : vector<64x128xf32>, vector<128x128xf32>, vector<64x128xf32> -> vector<64x128xf32>
    %c2_75 = arith.constant 2 : index
    %c0_76 = arith.constant 0 : index
    %c0_77 = arith.constant 0 : index
    %135 = vector.load %arg3[%c2_75, %c0_76, %c0_77] : memref<4x1x128xf32, #tpu.memory_space<vmem>>, vector<1x1x128xf32>
    %136 = vector.shape_cast %135 : vector<1x1x128xf32> to vector<1x128xf32>
    %c2_78 = arith.constant 2 : index
    %c0_79 = arith.constant 0 : index
    %c0_80 = arith.constant 0 : index
    %137 = vector.load %arg4[%c2_78, %c0_79, %c0_80] : memref<4x1x128xf32, #tpu.memory_space<vmem>>, vector<1x1x128xf32>
    %138 = vector.shape_cast %137 : vector<1x1x128xf32> to vector<1x128xf32>
    %cst_81 = arith.constant dense<0.000000e+00> : vector<128xf32>
    %139 = vector.multi_reduction <add>, %134, %cst_81 [0] : vector<64x128xf32> to vector<128xf32>
    %140 = vector.shape_cast %139 : vector<128xf32> to vector<1x128xf32>
    %cst_82 = arith.constant 1.562500e-02 : f32
    %141 = vector.broadcast %cst_82 : f32 to vector<1x128xf32>
    %142 = arith.mulf %140, %141 : vector<1x128xf32>
    %143 = vector.broadcast %142 : vector<1x128xf32> to vector<64x128xf32>
    %144 = arith.subf %134, %143 : vector<64x128xf32>
    %145 = arith.mulf %144, %144 : vector<64x128xf32>
    %cst_83 = arith.constant dense<0.000000e+00> : vector<128xf32>
    %146 = vector.multi_reduction <add>, %145, %cst_83 [0] : vector<64x128xf32> to vector<128xf32>
    %147 = vector.shape_cast %146 : vector<128xf32> to vector<1x128xf32>
    %cst_84 = arith.constant 1.562500e-02 : f32
    %148 = vector.broadcast %cst_84 : f32 to vector<1x128xf32>
    %149 = arith.mulf %147, %148 : vector<1x128xf32>
    %cst_85 = arith.constant 9.99999974E-6 : f32
    %150 = vector.broadcast %cst_85 : f32 to vector<1x128xf32>
    %151 = arith.addf %149, %150 : vector<1x128xf32>
    %152 = math.rsqrt %151 : vector<1x128xf32>
    %153 = arith.mulf %136, %152 : vector<1x128xf32>
    %154 = arith.mulf %142, %153 : vector<1x128xf32>
    %155 = arith.subf %138, %154 : vector<1x128xf32>
    %156 = vector.broadcast %153 : vector<1x128xf32> to vector<64x128xf32>
    %157 = arith.mulf %134, %156 : vector<64x128xf32>
    %158 = vector.broadcast %155 : vector<1x128xf32> to vector<64x128xf32>
    %159 = arith.addf %157, %158 : vector<64x128xf32>
    %cst_86 = arith.constant 0.00999999977 : f32
    %160 = vector.broadcast %cst_86 : f32 to vector<64x128xf32>
    %161 = arith.mulf %160, %159 : vector<64x128xf32>
    %162 = arith.maximumf %159, %161 : vector<64x128xf32>
    %c2_87 = arith.constant 2 : index
    %c0_88 = arith.constant 0 : index
    %c0_89 = arith.constant 0 : index
    %163 = vector.load %arg5[%c2_87, %c0_88, %c0_89] : memref<4x128x128xf32, #tpu.memory_space<vmem>>, vector<1x128x128xf32>
    %164 = vector.shape_cast %163 : vector<1x128x128xf32> to vector<128x128xf32>
    %cst_90 = arith.constant dense<0.000000e+00> : vector<64x128xf32>
    %165 = tpu.matmul %162, %164, %cst_90 {dimension_numbers = #tpu.dot_dimension_numbers<[1], [0], [0], [1], [0, 0, 1, 1], [], []>} : vector<64x128xf32>, vector<128x128xf32>, vector<64x128xf32> -> vector<64x128xf32>
    %c2_91 = arith.constant 2 : index
    %c0_92 = arith.constant 0 : index
    %c0_93 = arith.constant 0 : index
    %166 = vector.load %arg6[%c2_91, %c0_92, %c0_93] : memref<4x1x128xf32, #tpu.memory_space<vmem>>, vector<1x1x128xf32>
    %167 = vector.shape_cast %166 : vector<1x1x128xf32> to vector<1x128xf32>
    %c2_94 = arith.constant 2 : index
    %c0_95 = arith.constant 0 : index
    %c0_96 = arith.constant 0 : index
    %168 = vector.load %arg7[%c2_94, %c0_95, %c0_96] : memref<4x1x128xf32, #tpu.memory_space<vmem>>, vector<1x1x128xf32>
    %169 = vector.shape_cast %168 : vector<1x1x128xf32> to vector<1x128xf32>
    %cst_97 = arith.constant dense<0.000000e+00> : vector<128xf32>
    %170 = vector.multi_reduction <add>, %165, %cst_97 [0] : vector<64x128xf32> to vector<128xf32>
    %171 = vector.shape_cast %170 : vector<128xf32> to vector<1x128xf32>
    %cst_98 = arith.constant 1.562500e-02 : f32
    %172 = vector.broadcast %cst_98 : f32 to vector<1x128xf32>
    %173 = arith.mulf %171, %172 : vector<1x128xf32>
    %174 = vector.broadcast %173 : vector<1x128xf32> to vector<64x128xf32>
    %175 = arith.subf %165, %174 : vector<64x128xf32>
    %176 = arith.mulf %175, %175 : vector<64x128xf32>
    %cst_99 = arith.constant dense<0.000000e+00> : vector<128xf32>
    %177 = vector.multi_reduction <add>, %176, %cst_99 [0] : vector<64x128xf32> to vector<128xf32>
    %178 = vector.shape_cast %177 : vector<128xf32> to vector<1x128xf32>
    %cst_100 = arith.constant 1.562500e-02 : f32
    %179 = vector.broadcast %cst_100 : f32 to vector<1x128xf32>
    %180 = arith.mulf %178, %179 : vector<1x128xf32>
    %cst_101 = arith.constant 9.99999974E-6 : f32
    %181 = vector.broadcast %cst_101 : f32 to vector<1x128xf32>
    %182 = arith.addf %180, %181 : vector<1x128xf32>
    %183 = math.rsqrt %182 : vector<1x128xf32>
    %184 = arith.mulf %167, %183 : vector<1x128xf32>
    %185 = arith.mulf %173, %184 : vector<1x128xf32>
    %186 = arith.subf %169, %185 : vector<1x128xf32>
    %187 = vector.broadcast %184 : vector<1x128xf32> to vector<64x128xf32>
    %188 = arith.mulf %165, %187 : vector<64x128xf32>
    %189 = vector.broadcast %186 : vector<1x128xf32> to vector<64x128xf32>
    %190 = arith.addf %188, %189 : vector<64x128xf32>
    %cst_102 = arith.constant 0.00999999977 : f32
    %191 = vector.broadcast %cst_102 : f32 to vector<64x128xf32>
    %192 = arith.mulf %191, %190 : vector<64x128xf32>
    %193 = arith.maximumf %190, %192 : vector<64x128xf32>
    %c0_103 = arith.constant 0 : index
    %c384 = arith.constant 384 : index
    %194 = vector.load %arg8[%c0_103, %c384] : memref<64x640xf32, #tpu.memory_space<vmem>>, vector<64x128xf32>
    tpu.vector_store %arg8[%c0_103, %c384], %193 {strides = array<i32>} : memref<64x640xf32, #tpu.memory_space<vmem>>, vector<64x128xf32>,
    %cst_104 = arith.constant dense<0.000000e+00> : vector<64x128xf32>
    %195 = tpu.matmul %2, %193, %cst_104 {dimension_numbers = #tpu.dot_dimension_numbers<[1], [0], [0], [1], [0, 0, 1, 1], [], []>} : vector<64x64xf32>, vector<64x128xf32>, vector<64x128xf32> -> vector<64x128xf32>
    %c3 = arith.constant 3 : index
    %c0_105 = arith.constant 0 : index
    %c0_106 = arith.constant 0 : index
    %196 = vector.load %arg2[%c3, %c0_105, %c0_106] : memref<4x128x128xf32, #tpu.memory_space<vmem>>, vector<1x128x128xf32>
    %197 = vector.shape_cast %196 : vector<1x128x128xf32> to vector<128x128xf32>
    %cst_107 = arith.constant dense<0.000000e+00> : vector<64x128xf32>
    %198 = tpu.matmul %195, %197, %cst_107 {dimension_numbers = #tpu.dot_dimension_numbers<[1], [0], [0], [1], [0, 0, 1, 1], [], []>} : vector<64x128xf32>, vector<128x128xf32>, vector<64x128xf32> -> vector<64x128xf32>
    %c3_108 = arith.constant 3 : index
    %c0_109 = arith.constant 0 : index
    %c0_110 = arith.constant 0 : index
    %199 = vector.load %arg3[%c3_108, %c0_109, %c0_110] : memref<4x1x128xf32, #tpu.memory_space<vmem>>, vector<1x1x128xf32>
    %200 = vector.shape_cast %199 : vector<1x1x128xf32> to vector<1x128xf32>
    %c3_111 = arith.constant 3 : index
    %c0_112 = arith.constant 0 : index
    %c0_113 = arith.constant 0 : index
    %201 = vector.load %arg4[%c3_111, %c0_112, %c0_113] : memref<4x1x128xf32, #tpu.memory_space<vmem>>, vector<1x1x128xf32>
    %202 = vector.shape_cast %201 : vector<1x1x128xf32> to vector<1x128xf32>
    %cst_114 = arith.constant dense<0.000000e+00> : vector<128xf32>
    %203 = vector.multi_reduction <add>, %198, %cst_114 [0] : vector<64x128xf32> to vector<128xf32>
    %204 = vector.shape_cast %203 : vector<128xf32> to vector<1x128xf32>
    %cst_115 = arith.constant 1.562500e-02 : f32
    %205 = vector.broadcast %cst_115 : f32 to vector<1x128xf32>
    %206 = arith.mulf %204, %205 : vector<1x128xf32>
    %207 = vector.broadcast %206 : vector<1x128xf32> to vector<64x128xf32>
    %208 = arith.subf %198, %207 : vector<64x128xf32>
    %209 = arith.mulf %208, %208 : vector<64x128xf32>
    %cst_116 = arith.constant dense<0.000000e+00> : vector<128xf32>
    %210 = vector.multi_reduction <add>, %209, %cst_116 [0] : vector<64x128xf32> to vector<128xf32>
    %211 = vector.shape_cast %210 : vector<128xf32> to vector<1x128xf32>
    %cst_117 = arith.constant 1.562500e-02 : f32
    %212 = vector.broadcast %cst_117 : f32 to vector<1x128xf32>
    %213 = arith.mulf %211, %212 : vector<1x128xf32>
    %cst_118 = arith.constant 9.99999974E-6 : f32
    %214 = vector.broadcast %cst_118 : f32 to vector<1x128xf32>
    %215 = arith.addf %213, %214 : vector<1x128xf32>
    %216 = math.rsqrt %215 : vector<1x128xf32>
    %217 = arith.mulf %200, %216 : vector<1x128xf32>
    %218 = arith.mulf %206, %217 : vector<1x128xf32>
    %219 = arith.subf %202, %218 : vector<1x128xf32>
    %220 = vector.broadcast %217 : vector<1x128xf32> to vector<64x128xf32>
    %221 = arith.mulf %198, %220 : vector<64x128xf32>
    %222 = vector.broadcast %219 : vector<1x128xf32> to vector<64x128xf32>
    %223 = arith.addf %221, %222 : vector<64x128xf32>
    %cst_119 = arith.constant 0.00999999977 : f32
    %224 = vector.broadcast %cst_119 : f32 to vector<64x128xf32>
    %225 = arith.mulf %224, %223 : vector<64x128xf32>
    %226 = arith.maximumf %223, %225 : vector<64x128xf32>
    %c3_120 = arith.constant 3 : index
    %c0_121 = arith.constant 0 : index
    %c0_122 = arith.constant 0 : index
    %227 = vector.load %arg5[%c3_120, %c0_121, %c0_122] : memref<4x128x128xf32, #tpu.memory_space<vmem>>, vector<1x128x128xf32>
    %228 = vector.shape_cast %227 : vector<1x128x128xf32> to vector<128x128xf32>
    %cst_123 = arith.constant dense<0.000000e+00> : vector<64x128xf32>
    %229 = tpu.matmul %226, %228, %cst_123 {dimension_numbers = #tpu.dot_dimension_numbers<[1], [0], [0], [1], [0, 0, 1, 1], [], []>} : vector<64x128xf32>, vector<128x128xf32>, vector<64x128xf32> -> vector<64x128xf32>
    %c3_124 = arith.constant 3 : index
    %c0_125 = arith.constant 0 : index
    %c0_126 = arith.constant 0 : index
    %230 = vector.load %arg6[%c3_124, %c0_125, %c0_126] : memref<4x1x128xf32, #tpu.memory_space<vmem>>, vector<1x1x128xf32>
    %231 = vector.shape_cast %230 : vector<1x1x128xf32> to vector<1x128xf32>
    %c3_127 = arith.constant 3 : index
    %c0_128 = arith.constant 0 : index
    %c0_129 = arith.constant 0 : index
    %232 = vector.load %arg7[%c3_127, %c0_128, %c0_129] : memref<4x1x128xf32, #tpu.memory_space<vmem>>, vector<1x1x128xf32>
    %233 = vector.shape_cast %232 : vector<1x1x128xf32> to vector<1x128xf32>
    %cst_130 = arith.constant dense<0.000000e+00> : vector<128xf32>
    %234 = vector.multi_reduction <add>, %229, %cst_130 [0] : vector<64x128xf32> to vector<128xf32>
    %235 = vector.shape_cast %234 : vector<128xf32> to vector<1x128xf32>
    %cst_131 = arith.constant 1.562500e-02 : f32
    %236 = vector.broadcast %cst_131 : f32 to vector<1x128xf32>
    %237 = arith.mulf %235, %236 : vector<1x128xf32>
    %238 = vector.broadcast %237 : vector<1x128xf32> to vector<64x128xf32>
    %239 = arith.subf %229, %238 : vector<64x128xf32>
    %240 = arith.mulf %239, %239 : vector<64x128xf32>
    %cst_132 = arith.constant dense<0.000000e+00> : vector<128xf32>
    %241 = vector.multi_reduction <add>, %240, %cst_132 [0] : vector<64x128xf32> to vector<128xf32>
    %242 = vector.shape_cast %241 : vector<128xf32> to vector<1x128xf32>
    %cst_133 = arith.constant 1.562500e-02 : f32
    %243 = vector.broadcast %cst_133 : f32 to vector<1x128xf32>
    %244 = arith.mulf %242, %243 : vector<1x128xf32>
    %cst_134 = arith.constant 9.99999974E-6 : f32
    %245 = vector.broadcast %cst_134 : f32 to vector<1x128xf32>
    %246 = arith.addf %244, %245 : vector<1x128xf32>
    %247 = math.rsqrt %246 : vector<1x128xf32>
    %248 = arith.mulf %231, %247 : vector<1x128xf32>
    %249 = arith.mulf %237, %248 : vector<1x128xf32>
    %250 = arith.subf %233, %249 : vector<1x128xf32>
    %251 = vector.broadcast %248 : vector<1x128xf32> to vector<64x128xf32>
    %252 = arith.mulf %229, %251 : vector<64x128xf32>
    %253 = vector.broadcast %250 : vector<1x128xf32> to vector<64x128xf32>
    %254 = arith.addf %252, %253 : vector<64x128xf32>
    %cst_135 = arith.constant 0.00999999977 : f32
    %255 = vector.broadcast %cst_135 : f32 to vector<64x128xf32>
    %256 = arith.mulf %255, %254 : vector<64x128xf32>
    %257 = arith.maximumf %254, %256 : vector<64x128xf32>
    %c0_136 = arith.constant 0 : index
    %c512 = arith.constant 512 : index
    %258 = vector.load %arg8[%c0_136, %c512] : memref<64x640xf32, #tpu.memory_space<vmem>>, vector<64x128xf32>
    tpu.vector_store %arg8[%c0_136, %c512], %257 {strides = array<i32>} : memref<64x640xf32, #tpu.memory_space<vmem>>, vector<64x128xf32>,
    return
  }
}

</mosaic_0001>

<llo_original>
// kernel: gin_forward_packed.1
$region0: #{gin_forward_packed.1}
  #allocation0 [shape = 'u32[]', space=smem, size = 0x4, offset = 0x4, fixed_abs, tag = 'smem constant byte address 0x4 - core index']
  #allocation1 [shape = 'u32[72,128]{1,0:T(1,128)}', space=vmem, size = 0x9000, scoped, tag = 'internal scratch']
  %s0 = inlined_call_operand.hbm [shape: f32[64,64], index: 0, kind: input, shape index: {}]
  %s1 = inlined_call_operand.hbm [shape: f32[64,128], index: 1, kind: input, shape index: {}]
  %s2 = inlined_call_operand.hbm [shape: f32[4,128,128], index: 2, kind: input, shape index: {}]
  %s3 = inlined_call_operand.hbm [shape: f32[4,1,128], index: 3, kind: input, shape index: {}]
  %s4 = inlined_call_operand.hbm [shape: f32[4,1,128], index: 4, kind: input, shape index: {}]
  %s5 = inlined_call_operand.hbm [shape: f32[4,128,128], index: 5, kind: input, shape index: {}]
  %s6 = inlined_call_operand.vmem [shape: f32[4,1,128], index: 6, kind: input, shape index: {}]
  %s7 = inlined_call_operand.hbm [shape: f32[4,1,128], index: 7, kind: input, shape index: {}]
  %s8 = inlined_call_operand.vmem [shape: f32[64,640], index: 8, kind: output, shape index: {}]
  %s9 = sld [smem:[#allocation0]]
  $region70: #{gin_forward_packed.1} parent=0
    _
  %s11 = ssub.s32 1, %s9
  %s12 = scalar_select 0, %s11, %s9
  $region1: #{gin_forward_packed.1} parent=0
    #allocation2 [shape = 'u8[32768]{0}', space=vmem, size = 0x8000, scoped, tag = 'input window, operand 0, single buffered']
    #allocation3 [shape = 's32[1]{0}', space=sflag, size = 0x4, scoped, tag = 'scoped memory for gin_forward_packed.1']
    #allocation4 [shape = 'u8[32768]{0}', space=vmem, size = 0x8000, scoped, tag = 'input window, operand 1, single buffered']
    #allocation5 [shape = 's32[1]{0}', space=sflag, size = 0x4, scoped, tag = 'scoped memory for gin_forward_packed.1']
    #allocation6 [shape = 'u8[262144]{0}', space=vmem, size = 0x40000, scoped, tag = 'input window, operand 2, single buffered']
    #allocation7 [shape = 'u8[2048]{0}', space=vmem, size = 0x800, scoped, tag = 'input window, operand 3, single buffered']
    #allocation8 [shape = 's32[1]{0}', space=sflag, size = 0x4, scoped, tag = 'scoped memory for gin_forward_packed.1']
    #allocation9 [shape = 'u8[2048]{0}', space=vmem, size = 0x800, scoped, tag = 'input window, operand 4, single buffered']
    #allocation10 [shape = 'u8[262144]{0}', space=vmem, size = 0x40000, scoped, tag = 'input window, operand 5, single buffered']
    #allocation11 [shape = 's32[1]{0}', space=sflag, size = 0x4, scoped, tag = 'scoped memory for gin_forward_packed.1']
    #allocation12 [shape = 'u8[2048]{0}', space=vmem, size = 0x800, scoped, tag = 'input window, operand 7, single buffered']
    %13 = vsyncpa [#allocation3], 0
    %14 = vsyncpa [#allocation5], 0
    %15 = vsyncpa [#allocation8], 0
    %16 = vsyncpa [#allocation11], 0
    // Predicated region
    $region2: #{gin_forward_packed.1} parent=1 // pred_check
      _
    $region3: #{gin_forward_packed.1} parent=1 // pred_check_branch
      %18 = sbr.rel (0) target = $region5
    $region4: #{gin_forward_packed.1} parent=1 // pred_region
      %20 = vsyncadd [#allocation3], 0
      %s21 = sshll.u32 %s0, 4
      %s22 = int_to_ptr.hbm [resolvable:$true] %s21
      %s23 = sshll.u32 [#allocation2], 4
      %s24 = int_to_ptr.vmem [resolvable:$true] %s23
      %29 = dma.hbm_to_vmem [thread:$0]  %s22, 1024, %s24, [#allocation3], 128, 128, 8
    $region5: #{gin_forward_packed.1} parent=1 // pred_fallthru
      _
    // Predicated region
    $region6: #{gin_forward_packed.1} parent=1 // pred_check
      _
    $region7: #{gin_forward_packed.1} parent=1 // pred_check_branch
      %31 = sbr.rel (0) target = $region9
    $region8: #{gin_forward_packed.1} parent=1 // pred_region
      %33 = vsyncadd [#allocation5], 0
      %s34 = sshll.u32 %s1, 4
      %s35 = int_to_ptr.hbm [resolvable:$true] %s34
      %s36 = sshll.u32 [#allocation4], 4
      %s37 = int_to_ptr.vmem [resolvable:$true] %s36
      %42 = dma.hbm_to_vmem [thread:$0]  %s35, 1024, %s37, [#allocation5], 128, 128, 8
    $region9: #{gin_forward_packed.1} parent=1 // pred_fallthru
      _
    // Predicated region
    $region10: #{gin_forward_packed.1} parent=1 // pred_check
      _
    $region11: #{gin_forward_packed.1} parent=1 // pred_check_branch
      %44 = sbr.rel (0) target = $region13
    $region12: #{gin_forward_packed.1} parent=1 // pred_region
      %46 = vsyncadd [#allocation5], 0
      %s47 = sshll.u32 %s2, 4
      %s48 = int_to_ptr.hbm [resolvable:$true] %s47
      %s49 = sshll.u32 [#allocation6], 4
      %s50 = int_to_ptr.vmem [resolvable:$true] %s49
      %55 = dma.hbm_to_vmem [thread:$0]  %s48, 8192, %s50, [#allocation5], 128, 128, 8
    $region13: #{gin_forward_packed.1} parent=1 // pred_fallthru
      _
    // Predicated region
    $region14: #{gin_forward_packed.1} parent=1 // pred_check
      _
    $region15: #{gin_forward_packed.1} parent=1 // pred_check_branch
      %57 = sbr.rel (0) target = $region17
    $region16: #{gin_forward_packed.1} parent=1 // pred_region
      %59 = vsyncadd [#allocation8], 0
      %s60 = sshll.u32 %s3, 4
      %s61 = int_to_ptr.hbm [resolvable:$true] %s60
      %s62 = sshll.u32 [#allocation7], 4
      %s63 = int_to_ptr.vmem [resolvable:$true] %s62
      %68 = dma.hbm_to_vmem [thread:$0]  %s61, 64, %s63, [#allocation8], 16, 16, 1
    $region17: #{gin_forward_packed.1} parent=1 // pred_fallthru
      _
    // Predicated region
    $region18: #{gin_forward_packed.1} parent=1 // pred_check
      _
    $region19: #{gin_forward_packed.1} parent=1 // pred_check_branch
      %70 = sbr.rel (0) target = $region21
    $region20: #{gin_forward_packed.1} parent=1 // pred_region
      %72 = vsyncadd [#allocation8], 0
      %s73 = sshll.u32 %s4, 4
      %s74 = int_to_ptr.hbm [resolvable:$true] %s73
      %s75 = sshll.u32 [#allocation9], 4
      %s76 = int_to_ptr.vmem [resolvable:$true] %s75
      %81 = dma.hbm_to_vmem [thread:$0]  %s74, 64, %s76, [#allocation8], 16, 16, 1
    $region21: #{gin_forward_packed.1} parent=1 // pred_fallthru
      _
    // Predicated region
    $region22: #{gin_forward_packed.1} parent=1 // pred_check
      _
    $region23: #{gin_forward_packed.1} parent=1 // pred_check_branch
      %83 = sbr.rel (0) target = $region25
    $region24: #{gin_forward_packed.1} parent=1 // pred_region
      %85 = vsyncadd [#allocation11], 0
      %s86 = sshll.u32 %s5, 4
      %s87 = int_to_ptr.hbm [resolvable:$true] %s86
      %s88 = sshll.u32 [#allocation10], 4
      %s89 = int_to_ptr.vmem [resolvable:$true] %s88
      %94 = dma.hbm_to_vmem [thread:$0]  %s87, 8192, %s89, [#allocation11], 128, 128, 8
    $region25: #{gin_forward_packed.1} parent=1 // pred_fallthru
      _
    // Predicated region
    $region26: #{gin_forward_packed.1} parent=1 // pred_check
      _
    $region27: #{gin_forward_packed.1} parent=1 // pred_check_branch
      %96 = sbr.rel (0) target = $region29
    $region28: #{gin_forward_packed.1} parent=1 // pred_region
      _
    $region29: #{gin_forward_packed.1} parent=1 // pred_fallthru
      _
    // Predicated region
    $region30: #{gin_forward_packed.1} parent=1 // pred_check
      _
    $region31: #{gin_forward_packed.1} parent=1 // pred_check_branch
      %98 = sbr.rel (0) target = $region33
    $region32: #{gin_forward_packed.1} parent=1 // pred_region
      %100 = vsyncadd [#allocation11], 0
      %s101 = sshll.u32 %s7, 4
      %s102 = int_to_ptr.hbm [resolvable:$true] %s101
      %s103 = sshll.u32 [#allocation12], 4
      %s104 = int_to_ptr.vmem [resolvable:$true] %s103
      %109 = dma.hbm_to_vmem [thread:$0]  %s102, 64, %s104, [#allocation11], 16, 16, 1
    $region33: #{gin_forward_packed.1} parent=1 // pred_fallthru
      _
    // Predicated region
    $region34: #{gin_forward_packed.1} parent=1 // pred_check
      _
    $region35: #{gin_forward_packed.1} parent=1 // pred_check_branch
      %111 = sbr.rel (0) target = $region37
    $region36: #{gin_forward_packed.1} parent=1 // pred_region
      %113 = dma.done [#allocation3], 1024
    $region37: #{gin_forward_packed.1} parent=1 // pred_fallthru
      _
    // Predicated region
    $region38: #{gin_forward_packed.1} parent=1 // pred_check
      _
    $region39: #{gin_forward_packed.1} parent=1 // pred_check_branch
      %115 = sbr.rel (0) target = $region41
    $region40: #{gin_forward_packed.1} parent=1 // pred_region
      %117 = dma.done [#allocation5], 1024
    $region41: #{gin_forward_packed.1} parent=1 // pred_fallthru
      _
    // Predicated region
    $region42: #{gin_forward_packed.1} parent=1 // pred_check
      _
    $region43: #{gin_forward_packed.1} parent=1 // pred_check_branch
      %119 = sbr.rel (0) target = $region45
    $region44: #{gin_forward_packed.1} parent=1 // pred_region
      %121 = dma.done [#allocation5], 8192
    $region45: #{gin_forward_packed.1} parent=1 // pred_fallthru
      _
    // Predicated region
    $region46: #{gin_forward_packed.1} parent=1 // pred_check
      _
    $region47: #{gin_forward_packed.1} parent=1 // pred_check_branch
      %123 = sbr.rel (0) target = $region49
    $region48: #{gin_forward_packed.1} parent=1 // pred_region
      %125 = dma.done [#allocation8], 64
    $region49: #{gin_forward_packed.1} parent=1 // pred_fallthru
      _
    // Predicated region
    $region50: #{gin_forward_packed.1} parent=1 // pred_check
      _
    $region51: #{gin_forward_packed.1} parent=1 // pred_check_branch
      %127 = sbr.rel (0) target = $region53
    $region52: #{gin_forward_packed.1} parent=1 // pred_region
      %129 = dma.done [#allocation8], 64
    $region53: #{gin_forward_packed.1} parent=1 // pred_fallthru
      _
    // Predicated region
    $region54: #{gin_forward_packed.1} parent=1 // pred_check
      _
    $region55: #{gin_forward_packed.1} parent=1 // pred_check_branch
      %131 = sbr.rel (0) target = $region57
    $region56: #{gin_forward_packed.1} parent=1 // pred_region
      %133 = dma.done [#allocation11], 8192
    $region57: #{gin_forward_packed.1} parent=1 // pred_fallthru
      _
    // Predicated region
    $region58: #{gin_forward_packed.1} parent=1 // pred_check
      _
    $region59: #{gin_forward_packed.1} parent=1 // pred_check_branch
      %135 = sbr.rel (0) target = $region61
    $region60: #{gin_forward_packed.1} parent=1 // pred_region
      %137 = dma.done [#allocation11], 64
    $region61: #{gin_forward_packed.1} parent=1 // pred_fallthru
      _
    %v138 = vld [vmem:[#allocation4] sm:$0xff]
    %v139 = vld [vmem:[#allocation4 + $0x8] sm:$0xff]
    %v140 = vld [vmem:[#allocation4 + $0x10] sm:$0xff]
    %v141 = vld [vmem:[#allocation4 + $0x18] sm:$0xff]
    %v142 = vld [vmem:[#allocation4 + $0x20] sm:$0xff]
    %v143 = vld [vmem:[#allocation4 + $0x28] sm:$0xff]
    %v144 = vld [vmem:[#allocation4 + $0x30] sm:$0xff]
    %v145 = vld [vmem:[#allocation4 + $0x38] sm:$0xff]
    %146 = vst [vmem:[%s8] sm:$0xff] %v138
    %147 = vst [vmem:[%s8 + $0x28] sm:$0xff] %v139
    %148 = vst [vmem:[%s8 + $0x50] sm:$0xff] %v140
    %149 = vst [vmem:[%s8 + $0x78] sm:$0xff] %v141
    %150 = vst [vmem:[%s8 + $0xa0] sm:$0xff] %v142
    %151 = vst [vmem:[%s8 + $0xc8] sm:$0xff] %v143
    %152 = vst [vmem:[%s8 + $0xf0] sm:$0xff] %v144
    %153 = vst [vmem:[%s8 + $0x118] sm:$0xff] %v145
    %v154 = vld [vmem:[#allocation2] sm:$0xff]
    %v155 = vld [vmem:[#allocation2 + $0x8] sm:$0xff]
    %v156 = vld [vmem:[#allocation2 + $0x10] sm:$0xff]
    %v157 = vld [vmem:[#allocation2 + $0x18] sm:$0xff]
    %v158 = vld [vmem:[#allocation2 + $0x20] sm:$0xff]
    %v159 = vld [vmem:[#allocation2 + $0x28] sm:$0xff]
    %v160 = vld [vmem:[#allocation2 + $0x30] sm:$0xff]
    %v161 = vld [vmem:[#allocation2 + $0x38] sm:$0xff]
    %vm162 = vcmask 523264
    %v164 = vsel %vm162, %v154, 0
    %v167 = vsel %vm162, %v155, 0
    %v170 = vsel %vm162, %v156, 0
    %v173 = vsel %vm162, %v157, 0
    %v176 = vsel %vm162, %v158, 0
    %v179 = vsel %vm162, %v159, 0
    %v182 = vsel %vm162, %v160, 0
    %v185 = vsel %vm162, %v161, 0
    %187 = vmatpush.msra.mxu0 0.0
    %188 = vmatpush.msra.mxu0 0.0
    %189 = vmatpush.msra.mxu0 0.0
    %190 = vmatpush.msra.mxu0 0.0
    %191 = vmatpush.msra.mxu0 0.0
    %192 = vmatpush.msra.mxu0 0.0
    %193 = vmatpush.msra.mxu0 0.0
    %194 = vmatpush.msra.mxu0 0.0
    %195 = vmatpush.msra.mxu0 %v145
    %196 = vmatpush.msra.mxu0 %v144
    %197 = vmatpush.msra.mxu0 %v143
    %198 = vmatpush.msra.mxu0 %v142
    %199 = vmatpush.msra.mxu0 %v141
    %200 = vmatpush.msra.mxu0 %v140
    %201 = vmatpush.msra.mxu0 %v139
    %202 = vmatpush.msra.mxu0 %v138
    %203 = vmatmul.f32.gmra.mxu0 %v164
    %v204 = vpop.f32.mrf.mxu0
    %v205 = vadd.f32 0.0, %v204
    %206 = vmatmul.f32.gmra.mxu0 %v167
    %v207 = vpop.f32.mrf.mxu0
    %v208 = vadd.f32 0.0, %v207
    %209 = vmatmul.f32.gmra.mxu0 %v170
    %v210 = vpop.f32.mrf.mxu0
    %v211 = vadd.f32 0.0, %v210
    %212 = vmatmul.f32.gmra.mxu0 %v173
    %v213 = vpop.f32.mrf.mxu0
    %v214 = vadd.f32 0.0, %v213
    %215 = vmatmul.f32.gmra.mxu0 %v176
    %v216 = vpop.f32.mrf.mxu0
    %v217 = vadd.f32 0.0, %v216
    %218 = vmatmul.f32.gmra.mxu0 %v179
    %v219 = vpop.f32.mrf.mxu0
    %v220 = vadd.f32 0.0, %v219
    %221 = vmatmul.f32.gmra.mxu0 %v182
    %v222 = vpop.f32.mrf.mxu0
    %v223 = vadd.f32 0.0, %v222
    %224 = vmatmul.f32.gmra.mxu0 %v185
    %v225 = vpop.f32.mrf.mxu0
    %v226 = vadd.f32 0.0, %v225
    %227 = vdwg.mxu0
    %v228 = vld [vmem:[#allocation6] sm:$0xff]
    %v229 = vld [vmem:[#allocation6 + $0x8] sm:$0xff]
    %v230 = vld [vmem:[#allocation6 + $0x10] sm:$0xff]
    %v231 = vld [vmem:[#allocation6 + $0x18] sm:$0xff]
    %v232 = vld [vmem:[#allocation6 + $0x20] sm:$0xff]
    %v233 = vld [vmem:[#allocation6 + $0x28] sm:$0xff]
    %v234 = vld [vmem:[#allocation6 + $0x30] sm:$0xff]
    %v235 = vld [vmem:[#allocation6 + $0x38] sm:$0xff]
    %v236 = vld [vmem:[#allocation6 + $0x40] sm:$0xff]
    %v237 = vld [vmem:[#allocation6 + $0x48] sm:$0xff]
    %v238 = vld [vmem:[#allocation6 + $0x50] sm:$0xff]
    %v239 = vld [vmem:[#allocation6 + $0x58] sm:$0xff]
    %v240 = vld [vmem:[#allocation6 + $0x60] sm:$0xff]
    %v241 = vld [vmem:[#allocation6 + $0x68] sm:$0xff]
    %v242 = vld [vmem:[#allocation6 + $0x70] sm:$0xff]
    %v243 = vld [vmem:[#allocation6 + $0x78] sm:$0xff]
    %244 = vmatpush.msra.mxu0 %v243
    %245 = vmatpush.msra.mxu0 %v242
    %246 = vmatpush.msra.mxu0 %v241
    %247 = vmatpush.msra.mxu0 %v240
    %248 = vmatpush.msra.mxu0 %v239
    %249 = vmatpush.msra.mxu0 %v238
    %250 = vmatpush.msra.mxu0 %v237
    %251 = vmatpush.msra.mxu0 %v236
    %252 = vmatpush.msra.mxu0 %v235
    %253 = vmatpush.msra.mxu0 %v234
    %254 = vmatpush.msra.mxu0 %v233
    %255 = vmatpush.msra.mxu0 %v232
    %256 = vmatpush.msra.mxu0 %v231
    %257 = vmatpush.msra.mxu0 %v230
    %258 = vmatpush.msra.mxu0 %v229
    %259 = vmatpush.msra.mxu0 %v228
    %260 = vmatmul.f32.gmra.mxu0 %v205
    %v261 = vpop.f32.mrf.mxu0
    %v262 = vadd.f32 0.0, %v261
    %263 = vmatmul.f32.gmra.mxu0 %v208
    %v264 = vpop.f32.mrf.mxu0
    %v265 = vadd.f32 0.0, %v264
    %266 = vmatmul.f32.gmra.mxu0 %v211
    %v267 = vpop.f32.mrf.mxu0
    %v268 = vadd.f32 0.0, %v267
    %269 = vmatmul.f32.gmra.mxu0 %v214
    %v270 = vpop.f32.mrf.mxu0
    %v271 = vadd.f32 0.0, %v270
    %272 = vmatmul.f32.gmra.mxu0 %v217
    %v273 = vpop.f32.mrf.mxu0
    %v274 = vadd.f32 0.0, %v273
    %275 = vmatmul.f32.gmra.mxu0 %v220
    %v276 = vpop.f32.mrf.mxu0
    %v277 = vadd.f32 0.0, %v276
    %278 = vmatmul.f32.gmra.mxu0 %v223
    %v279 = vpop.f32.mrf.mxu0
    %v280 = vadd.f32 0.0, %v279
    %281 = vmatmul.f32.gmra.mxu0 %v226
    %v282 = vpop.f32.mrf.mxu0
    %v283 = vadd.f32 0.0, %v282
    %284 = vdwg.mxu0
    %v285 = vld [vmem:[#allocation7] sm:$0x1]
    %v286 = vld [vmem:[#allocation9] sm:$0x1]
    %v287 = vadd.f32 %v262, %v265
    %v288 = vadd.f32 %v287, %v268
    %v289 = vadd.f32 %v288, %v271
    %v290 = vadd.f32 %v289, %v274
    %v291 = vadd.f32 %v290, %v277
    %v292 = vadd.f32 %v291, %v280
    %v293 = vadd.f32 %v292, %v283
    %v294 = vrot.slane %v293, 4
    %v295 = vadd.f32 %v293, %v294
    %v296 = vrot.slane %v295, 2
    %v297 = vadd.f32 %v295, %v296
    %v298 = vrot.slane %v297, 1
    %v299 = vadd.f32 %v297, %v298
    %v300 = vmul.f32 %v299, 0.015625
    %v301 = vsub.f32 %v262, %v300
    %v302 = vsub.f32 %v265, %v300
    %v303 = vsub.f32 %v268, %v300
    %v304 = vsub.f32 %v271, %v300
    %v305 = vsub.f32 %v274, %v300
    %v306 = vsub.f32 %v277, %v300
    %v307 = vsub.f32 %v280, %v300
    %v308 = vsub.f32 %v283, %v300
    %v309 = vmul.f32 %v301, %v301
    %v310 = vmul.f32 %v302, %v302
    %v311 = vmul.f32 %v303, %v303
    %v312 = vmul.f32 %v304, %v304
    %v313 = vmul.f32 %v305, %v305
    %v314 = vmul.f32 %v306, %v306
    %v315 = vmul.f32 %v307, %v307
    %v316 = vmul.f32 %v308, %v308
    %v317 = vadd.f32 %v309, %v310
    %v318 = vadd.f32 %v317, %v311
    %v319 = vadd.f32 %v318, %v312
    %v320 = vadd.f32 %v319, %v313
    %v321 = vadd.f32 %v320, %v314
    %v322 = vadd.f32 %v321, %v315
    %v323 = vadd.f32 %v322, %v316
    %v324 = vrot.slane %v323, 4
    %v325 = vadd.f32 %v323, %v324
    %v326 = vrot.slane %v325, 2
    %v327 = vadd.f32 %v325, %v326
    %v328 = vrot.slane %v327, 1
    %v329 = vadd.f32 %v327, %v328
    %v330 = vmul.f32 %v329, 0.015625
    %v331 = vadd.f32 %v330, 1e-05
    %v332 = vrsqrt.pop %v331
    %v333 = vmul.f32 %v332, %v331
    %v334 = vmul.f32 %v333, %v332
    %v335 = vmul.f32 0.5, %v334
    %v336 = vsub.f32 1.5, %v335
    %v337 = vmul.f32 %v332, %v336
    %vm338 = vweird.f32 %v331
    %vm339 = vweird.f32 %v332
    %vm340 = vmor %vm338, %vm339
    %v341 = vsel %vm340, %v332, %v337
    %v342 = vmul.f32 %v285, %v341
    %v343 = vmul.f32 %v300, %v342
    %v344 = vsub.f32 %v286, %v343
    %v346 = vperm.slane %v342, 0
    %v348 = vmul.f32 %v262, %v346
    %v349 = vmul.f32 %v265, %v346
    %v350 = vmul.f32 %v268, %v346
    %v351 = vmul.f32 %v271, %v346
    %v352 = vmul.f32 %v274, %v346
    %v353 = vmul.f32 %v277, %v346
    %v354 = vmul.f32 %v280, %v346
    %v355 = vmul.f32 %v283, %v346
    %v357 = vperm.slane %v344, 0
    %v359 = vadd.f32 %v348, %v357
    %v360 = vadd.f32 %v349, %v357
    %v361 = vadd.f32 %v350, %v357
    %v362 = vadd.f32 %v351, %v357
    %v363 = vadd.f32 %v352, %v357
    %v364 = vadd.f32 %v353, %v357
    %v365 = vadd.f32 %v354, %v357
    %v366 = vadd.f32 %v355, %v357
    %v367 = vmul.f32 %v359, 0.01
    %v368 = vmul.f32 %v360, 0.01
    %v369 = vmul.f32 %v361, 0.01
    %v370 = vmul.f32 %v362, 0.01
    %v371 = vmul.f32 %v363, 0.01
    %v372 = vmul.f32 %v364, 0.01
    %v373 = vmul.f32 %v365, 0.01
    %v374 = vmul.f32 %v366, 0.01
    %v375 = vmax.f32 %v359, %v367
    %v376 = vmax.f32 %v360, %v368
    %v377 = vmax.f32 %v361, %v369
    %v378 = vmax.f32 %v362, %v370
    %v379 = vmax.f32 %v363, %v371
    %v380 = vmax.f32 %v364, %v372
    %v381 = vmax.f32 %v365, %v373
    %v382 = vmax.f32 %v366, %v374
    %v383 = vld [vmem:[#allocation10] sm:$0xff]
    %v384 = vld [vmem:[#allocation10 + $0x8] sm:$0xff]
    %v385 = vld [vmem:[#allocation10 + $0x10] sm:$0xff]
    %v386 = vld [vmem:[#allocation10 + $0x18] sm:$0xff]
    %v387 = vld [vmem:[#allocation10 + $0x20] sm:$0xff]
    %v388 = vld [vmem:[#allocation10 + $0x28] sm:$0xff]
    %v389 = vld [vmem:[#allocation10 + $0x30] sm:$0xff]
    %v390 = vld [vmem:[#allocation10 + $0x38] sm:$0xff]
    %v391 = vld [vmem:[#allocation10 + $0x40] sm:$0xff]
    %v392 = vld [vmem:[#allocation10 + $0x48] sm:$0xff]
    %v393 = vld [vmem:[#allocation10 + $0x50] sm:$0xff]
    %v394 = vld [vmem:[#allocation10 + $0x58] sm:$0xff]
    %v395 = vld [vmem:[#allocation10 + $0x60] sm:$0xff]
    %v396 = vld [vmem:[#allocation10 + $0x68] sm:$0xff]
    %v397 = vld [vmem:[#allocation10 + $0x70] sm:$0xff]
    %v398 = vld [vmem:[#allocation10 + $0x78] sm:$0xff]
    %399 = vmatpush.msra.mxu0 %v398
    %400 = vmatpush.msra.mxu0 %v397
    %401 = vmatpush.msra.mxu0 %v396
    %402 = vmatpush.msra.mxu0 %v395
    %403 = vmatpush.msra.mxu0 %v394
    %404 = vmatpush.msra.mxu0 %v393
    %405 = vmatpush.msra.mxu0 %v392
    %406 = vmatpush.msra.mxu0 %v391
    %407 = vmatpush.msra.mxu0 %v390
    %408 = vmatpush.msra.mxu0 %v389
    %409 = vmatpush.msra.mxu0 %v388
    %410 = vmatpush.msra.mxu0 %v387
    %411 = vmatpush.msra.mxu0 %v386
    %412 = vmatpush.msra.mxu0 %v385
    %413 = vmatpush.msra.mxu0 %v384
    %414 = vmatpush.msra.mxu0 %v383
    %415 = vmatmul.f32.gmra.mxu0 %v375
    %v416 = vpop.f32.mrf.mxu0
    %v417 = vadd.f32 0.0, %v416
    %418 = vmatmul.f32.gmra.mxu0 %v376
    %v419 = vpop.f32.mrf.mxu0
    %v420 = vadd.f32 0.0, %v419
    %421 = vmatmul.f32.gmra.mxu0 %v377
    %v422 = vpop.f32.mrf.mxu0
    %v423 = vadd.f32 0.0, %v422
    %424 = vmatmul.f32.gmra.mxu0 %v378
    %v425 = vpop.f32.mrf.mxu0
    %v426 = vadd.f32 0.0, %v425
    %427 = vmatmul.f32.gmra.mxu0 %v379
    %v428 = vpop.f32.mrf.mxu0
    %v429 = vadd.f32 0.0, %v428
    %430 = vmatmul.f32.gmra.mxu0 %v380
    %v431 = vpop.f32.mrf.mxu0
    %v432 = vadd.f32 0.0, %v431
    %433 = vmatmul.f32.gmra.mxu0 %v381
    %v434 = vpop.f32.mrf.mxu0
    %v435 = vadd.f32 0.0, %v434
    %436 = vmatmul.f32.gmra.mxu0 %v382
    %v437 = vpop.f32.mrf.mxu0
    %v438 = vadd.f32 0.0, %v437
    %439 = vdwg.mxu0
    %v440 = vld [vmem:[%s6] sm:$0x1]
    %v441 = vld [vmem:[#allocation12] sm:$0x1]
    %v442 = vadd.f32 %v417, %v420
    %v443 = vadd.f32 %v442, %v423
    %v444 = vadd.f32 %v443, %v426
    %v445 = vadd.f32 %v444, %v429
    %v446 = vadd.f32 %v445, %v432
    %v447 = vadd.f32 %v446, %v435
    %v448 = vadd.f32 %v447, %v438
    %v449 = vrot.slane %v448, 4
    %v450 = vadd.f32 %v448, %v449
    %v451 = vrot.slane %v450, 2
    %v452 = vadd.f32 %v450, %v451
    %v453 = vrot.slane %v452, 1
    %v454 = vadd.f32 %v452, %v453
    %v455 = vmul.f32 %v454, 0.015625
    %v456 = vsub.f32 %v417, %v455
    %v457 = vsub.f32 %v420, %v455
    %v458 = vsub.f32 %v423, %v455
    %v459 = vsub.f32 %v426, %v455
    %v460 = vsub.f32 %v429, %v455
    %v461 = vsub.f32 %v432, %v455
    %v462 = vsub.f32 %v435, %v455
    %v463 = vsub.f32 %v438, %v455
    %v464 = vmul.f32 %v456, %v456
    %v465 = vmul.f32 %v457, %v457
    %v466 = vmul.f32 %v458, %v458
    %v467 = vmul.f32 %v459, %v459
    %v468 = vmul.f32 %v460, %v460
    %v469 = vmul.f32 %v461, %v461
    %v470 = vmul.f32 %v462, %v462
    %v471 = vmul.f32 %v463, %v463
    %v472 = vadd.f32 %v464, %v465
    %v473 = vadd.f32 %v472, %v466
    %v474 = vadd.f32 %v473, %v467
    %v475 = vadd.f32 %v474, %v468
    %v476 = vadd.f32 %v475, %v469
    %v477 = vadd.f32 %v476, %v470
    %v478 = vadd.f32 %v477, %v471
    %v479 = vrot.slane %v478, 4
    %v480 = vadd.f32 %v478, %v479
    %v481 = vrot.slane %v480, 2
    %v482 = vadd.f32 %v480, %v481
    %v483 = vrot.slane %v482, 1
    %v484 = vadd.f32 %v482, %v483
    %v485 = vmul.f32 %v484, 0.015625
    %v486 = vadd.f32 %v485, 1e-05
    %v487 = vrsqrt.pop %v486
    %v488 = vmul.f32 %v487, %v486
    %v489 = vmul.f32 %v488, %v487
    %v490 = vmul.f32 0.5, %v489
    %v491 = vsub.f32 1.5, %v490
    %v492 = vmul.f32 %v487, %v491
    %vm493 = vweird.f32 %v486
    %vm494 = vweird.f32 %v487
    %vm495 = vmor %vm493, %vm494
    %v496 = vsel %vm495, %v487, %v492
    %v497 = vmul.f32 %v440, %v496
    %v498 = vmul.f32 %v455, %v497
    %v499 = vsub.f32 %v441, %v498
    %v501 = vperm.slane %v497, 0
    %v503 = vmul.f32 %v417, %v501
    %v504 = vmul.f32 %v420, %v501
    %v505 = vmul.f32 %v423, %v501
    %v506 = vmul.f32 %v426, %v501
    %v507 = vmul.f32 %v429, %v501
    %v508 = vmul.f32 %v432, %v501
    %v509 = vmul.f32 %v435, %v501
    %v510 = vmul.f32 %v438, %v501
    %v512 = vperm.slane %v499, 0
    %v514 = vadd.f32 %v503, %v512
    %v515 = vadd.f32 %v504, %v512
    %v516 = vadd.f32 %v505, %v512
    %v517 = vadd.f32 %v506, %v512
    %v518 = vadd.f32 %v507, %v512
    %v519 = vadd.f32 %v508, %v512
    %v520 = vadd.f32 %v509, %v512
    %v521 = vadd.f32 %v510, %v512
    %v522 = vmul.f32 %v514, 0.01
    %v523 = vmul.f32 %v515, 0.01
    %v524 = vmul.f32 %v516, 0.01
    %v525 = vmul.f32 %v517, 0.01
    %v526 = vmul.f32 %v518, 0.01
    %v527 = vmul.f32 %v519, 0.01
    %v528 = vmul.f32 %v520, 0.01
    %v529 = vmul.f32 %v521, 0.01
    %v530 = vmax.f32 %v514, %v522
    %v531 = vmax.f32 %v515, %v523
    %v532 = vmax.f32 %v516, %v524
    %v533 = vmax.f32 %v517, %v525
    %v534 = vmax.f32 %v518, %v526
    %v535 = vmax.f32 %v519, %v527
    %v536 = vmax.f32 %v520, %v528
    %v537 = vmax.f32 %v521, %v529
    %538 = vst [vmem:[%s8 + $0x8] sm:$0xff] %v530
    %539 = vst [vmem:[%s8 + $0x30] sm:$0xff] %v531
    %540 = vst [vmem:[%s8 + $0x58] sm:$0xff] %v532
    %541 = vst [vmem:[%s8 + $0x80] sm:$0xff] %v533
    %542 = vst [vmem:[%s8 + $0xa8] sm:$0xff] %v534
    %543 = vst [vmem:[%s8 + $0xd0] sm:$0xff] %v535
    %544 = vst [vmem:[%s8 + $0xf8] sm:$0xff] %v536
    %545 = vst [vmem:[%s8 + $0x120] sm:$0xff] %v537
    %546 = vmatpush.msra.mxu0 0.0
    %547 = vmatpush.msra.mxu0 0.0
    %548 = vmatpush.msra.mxu0 0.0
    %549 = vmatpush.msra.mxu0 0.0
    %550 = vmatpush.msra.mxu0 0.0
    %551 = vmatpush.msra.mxu0 0.0
    %552 = vmatpush.msra.mxu0 0.0
    %553 = vmatpush.msra.mxu0 0.0
    %554 = vmatpush.msra.mxu0 %v537
    %555 = vmatpush.msra.mxu0 %v536
    %556 = vmatpush.msra.mxu0 %v535
    %557 = vmatpush.msra.mxu0 %v534
    %558 = vmatpush.msra.mxu0 %v533
    %559 = vmatpush.msra.mxu0 %v532
    %560 = vmatpush.msra.mxu0 %v531
    %561 = vmatpush.msra.mxu0 %v530
    %562 = vmatmul.f32.gmra.mxu0 %v164
    %v563 = vpop.f32.mrf.mxu0
    %v564 = vadd.f32 0.0, %v563
    %565 = vmatmul.f32.gmra.mxu0 %v167
    %v566 = vpop.f32.mrf.mxu0
    %v567 = vadd.f32 0.0, %v566
    %568 = vmatmul.f32.gmra.mxu0 %v170
    %v569 = vpop.f32.mrf.mxu0
    %v570 = vadd.f32 0.0, %v569
    %571 = vmatmul.f32.gmra.mxu0 %v173
    %v572 = vpop.f32.mrf.mxu0
    %v573 = vadd.f32 0.0, %v572
    %574 = vmatmul.f32.gmra.mxu0 %v176
    %v575 = vpop.f32.mrf.mxu0
    %v576 = vadd.f32 0.0, %v575
    %577 = vmatmul.f32.gmra.mxu0 %v179
    %v578 = vpop.f32.mrf.mxu0
    %v579 = vadd.f32 0.0, %v578
    %580 = vmatmul.f32.gmra.mxu0 %v182
    %v581 = vpop.f32.mrf.mxu0
    %v582 = vadd.f32 0.0, %v581
    %583 = vmatmul.f32.gmra.mxu0 %v185
    %v584 = vpop.f32.mrf.mxu0
    %v585 = vadd.f32 0.0, %v584
    %586 = vdwg.mxu0
    %s587 = scalar_lea.vmem [#allocation6], 128
    %v588 = vld [vmem:[%s587] sm:$0xff]
    %v589 = vld [vmem:[%s587 + $0x8] sm:$0xff]
    %v590 = vld [vmem:[%s587 + $0x10] sm:$0xff]
    %v591 = vld [vmem:[%s587 + $0x18] sm:$0xff]
    %v592 = vld [vmem:[%s587 + $0x20] sm:$0xff]
    %v593 = vld [vmem:[%s587 + $0x28] sm:$0xff]
    %v594 = vld [vmem:[%s587 + $0x30] sm:$0xff]
    %v595 = vld [vmem:[%s587 + $0x38] sm:$0xff]
    %v596 = vld [vmem:[%s587 + $0x40] sm:$0xff]
    %v597 = vld [vmem:[%s587 + $0x48] sm:$0xff]
    %v598 = vld [vmem:[%s587 + $0x50] sm:$0xff]
    %v599 = vld [vmem:[%s587 + $0x58] sm:$0xff]
    %v600 = vld [vmem:[%s587 + $0x60] sm:$0xff]
    %v601 = vld [vmem:[%s587 + $0x68] sm:$0xff]
    %v602 = vld [vmem:[%s587 + $0x70] sm:$0xff]
    %v603 = vld [vmem:[%s587 + $0x78] sm:$0xff]
    %604 = vmatpush.msra.mxu0 %v603
    %605 = vmatpush.msra.mxu0 %v602
    %606 = vmatpush.msra.mxu0 %v601
    %607 = vmatpush.msra.mxu0 %v600
    %608 = vmatpush.msra.mxu0 %v599
    %609 = vmatpush.msra.mxu0 %v598
    %610 = vmatpush.msra.mxu0 %v597
    %611 = vmatpush.msra.mxu0 %v596
    %612 = vmatpush.msra.mxu0 %v595
    %613 = vmatpush.msra.mxu0 %v594
    %614 = vmatpush.msra.mxu0 %v593
    %615 = vmatpush.msra.mxu0 %v592
    %616 = vmatpush.msra.mxu0 %v591
    %617 = vmatpush.msra.mxu0 %v590
    %618 = vmatpush.msra.mxu0 %v589
    %619 = vmatpush.msra.mxu0 %v588
    %620 = vmatmul.f32.gmra.mxu0 %v564
    %v621 = vpop.f32.mrf.mxu0
    %v622 = vadd.f32 0.0, %v621
    %623 = vmatmul.f32.gmra.mxu0 %v567
    %v624 = vpop.f32.mrf.mxu0
    %v625 = vadd.f32 0.0, %v624
    %626 = vmatmul.f32.gmra.mxu0 %v570
    %v627 = vpop.f32.mrf.mxu0
    %v628 = vadd.f32 0.0, %v627
    %629 = vmatmul.f32.gmra.mxu0 %v573
    %v630 = vpop.f32.mrf.mxu0
    %v631 = vadd.f32 0.0, %v630
    %632 = vmatmul.f32.gmra.mxu0 %v576
    %v633 = vpop.f32.mrf.mxu0
    %v634 = vadd.f32 0.0, %v633
    %635 = vmatmul.f32.gmra.mxu0 %v579
    %v636 = vpop.f32.mrf.mxu0
    %v637 = vadd.f32 0.0, %v636
    %638 = vmatmul.f32.gmra.mxu0 %v582
    %v639 = vpop.f32.mrf.mxu0
    %v640 = vadd.f32 0.0, %v639
    %641 = vmatmul.f32.gmra.mxu0 %v585
    %v642 = vpop.f32.mrf.mxu0
    %v643 = vadd.f32 0.0, %v642
    %644 = vdwg.mxu0
    %s645 = scalar_lea.vmem [#allocation7], 1
    %v646 = vld [vmem:[%s645] sm:$0x1]
    %s647 = scalar_lea.vmem [#allocation9], 1
    %v648 = vld [vmem:[%s647] sm:$0x1]
    %v649 = vadd.f32 %v622, %v625
    %v650 = vadd.f32 %v649, %v628
    %v651 = vadd.f32 %v650, %v631
    %v652 = vadd.f32 %v651, %v634
    %v653 = vadd.f32 %v652, %v637
    %v654 = vadd.f32 %v653, %v640
    %v655 = vadd.f32 %v654, %v643
    %v656 = vrot.slane %v655, 4
    %v657 = vadd.f32 %v655, %v656
    %v658 = vrot.slane %v657, 2
    %v659 = vadd.f32 %v657, %v658
    %v660 = vrot.slane %v659, 1
    %v661 = vadd.f32 %v659, %v660
    %v662 = vmul.f32 %v661, 0.015625
    %v663 = vsub.f32 %v622, %v662
    %v664 = vsub.f32 %v625, %v662
    %v665 = vsub.f32 %v628, %v662
    %v666 = vsub.f32 %v631, %v662
    %v667 = vsub.f32 %v634, %v662
    %v668 = vsub.f32 %v637, %v662
    %v669 = vsub.f32 %v640, %v662
    %v670 = vsub.f32 %v643, %v662
    %v671 = vmul.f32 %v663, %v663
    %v672 = vmul.f32 %v664, %v664
    %v673 = vmul.f32 %v665, %v665
    %v674 = vmul.f32 %v666, %v666
    %v675 = vmul.f32 %v667, %v667
    %v676 = vmul.f32 %v668, %v668
    %v677 = vmul.f32 %v669, %v669
    %v678 = vmul.f32 %v670, %v670
    %v679 = vadd.f32 %v671, %v672
    %v680 = vadd.f32 %v679, %v673
    %v681 = vadd.f32 %v680, %v674
    %v682 = vadd.f32 %v681, %v675
    %v683 = vadd.f32 %v682, %v676
    %v684 = vadd.f32 %v683, %v677
    %v685 = vadd.f32 %v684, %v678
    %v686 = vrot.slane %v685, 4
    %v687 = vadd.f32 %v685, %v686
    %v688 = vrot.slane %v687, 2
    %v689 = vadd.f32 %v687, %v688
    %v690 = vrot.slane %v689, 1
    %v691 = vadd.f32 %v689, %v690
    %v692 = vmul.f32 %v691, 0.015625
    %v693 = vadd.f32 %v692, 1e-05
    %v694 = vrsqrt.pop %v693
    %v695 = vmul.f32 %v694, %v693
    %v696 = vmul.f32 %v695, %v694
    %v697 = vmul.f32 0.5, %v696
    %v698 = vsub.f32 1.5, %v697
    %v699 = vmul.f32 %v694, %v698
    %vm700 = vweird.f32 %v693
    %vm701 = vweird.f32 %v694
    %vm702 = vmor %vm700, %vm701
    %v703 = vsel %vm702, %v694, %v699
    %v704 = vmul.f32 %v646, %v703
    %v705 = vmul.f32 %v662, %v704
    %v706 = vsub.f32 %v648, %v705
    %v708 = vperm.slane %v704, 0
    %v710 = vmul.f32 %v622, %v708
    %v711 = vmul.f32 %v625, %v708
    %v712 = vmul.f32 %v628, %v708
    %v713 = vmul.f32 %v631, %v708
    %v714 = vmul.f32 %v634, %v708
    %v715 = vmul.f32 %v637, %v708
    %v716 = vmul.f32 %v640, %v708
    %v717 = vmul.f32 %v643, %v708
    %v719 = vperm.slane %v706, 0
    %v721 = vadd.f32 %v710, %v719
    %v722 = vadd.f32 %v711, %v719
    %v723 = vadd.f32 %v712, %v719
    %v724 = vadd.f32 %v713, %v719
    %v725 = vadd.f32 %v714, %v719
    %v726 = vadd.f32 %v715, %v719
    %v727 = vadd.f32 %v716, %v719
    %v728 = vadd.f32 %v717, %v719
    %v729 = vmul.f32 %v721, 0.01
    %v730 = vmul.f32 %v722, 0.01
    %v731 = vmul.f32 %v723, 0.01
    %v732 = vmul.f32 %v724, 0.01
    %v733 = vmul.f32 %v725, 0.01
    %v734 = vmul.f32 %v726, 0.01
    %v735 = vmul.f32 %v727, 0.01
    %v736 = vmul.f32 %v728, 0.01
    %v737 = vmax.f32 %v721, %v729
    %v738 = vmax.f32 %v722, %v730
    %v739 = vmax.f32 %v723, %v731
    %v740 = vmax.f32 %v724, %v732
    %v741 = vmax.f32 %v725, %v733
    %v742 = vmax.f32 %v726, %v734
    %v743 = vmax.f32 %v727, %v735
    %v744 = vmax.f32 %v728, %v736
    %s745 = scalar_lea.vmem [#allocation10], 128
    %v746 = vld [vmem:[%s745] sm:$0xff]
    %v747 = vld [vmem:[%s745 + $0x8] sm:$0xff]
    %v748 = vld [vmem:[%s745 + $0x10] sm:$0xff]
    %v749 = vld [vmem:[%s745 + $0x18] sm:$0xff]
    %v750 = vld [vmem:[%s745 + $0x20] sm:$0xff]
    %v751 = vld [vmem:[%s745 + $0x28] sm:$0xff]
    %v752 = vld [vmem:[%s745 + $0x30] sm:$0xff]
    %v753 = vld [vmem:[%s745 + $0x38] sm:$0xff]
    %v754 = vld [vmem:[%s745 + $0x40] sm:$0xff]
    %v755 = vld [vmem:[%s745 + $0x48] sm:$0xff]
    %v756 = vld [vmem:[%s745 + $0x50] sm:$0xff]
    %v757 = vld [vmem:[%s745 + $0x58] sm:$0xff]
    %v758 = vld [vmem:[%s745 + $0x60] sm:$0xff]
    %v759 = vld [vmem:[%s745 + $0x68] sm:$0xff]
    %v760 = vld [vmem:[%s745 + $0x70] sm:$0xff]
    %v761 = vld [vmem:[%s745 + $0x78] sm:$0xff]
    %762 = vmatpush.msra.mxu0 %v761
    %763 = vmatpush.msra.mxu0 %v760
    %764 = vmatpush.msra.mxu0 %v759
    %765 = vmatpush.msra.mxu0 %v758
    %766 = vmatpush.msra.mxu0 %v757
    %767 = vmatpush.msra.mxu0 %v756
    %768 = vmatpush.msra.mxu0 %v755
    %769 = vmatpush.msra.mxu0 %v754
    %770 = vmatpush.msra.mxu0 %v753
    %771 = vmatpush.msra.mxu0 %v752
    %772 = vmatpush.msra.mxu0 %v751
    %773 = vmatpush.msra.mxu0 %v750
    %774 = vmatpush.msra.mxu0 %v749
    %775 = vmatpush.msra.mxu0 %v748
    %776 = vmatpush.msra.mxu0 %v747
    %777 = vmatpush.msra.mxu0 %v746
    %778 = vmatmul.f32.gmra.mxu0 %v737
    %v779 = vpop.f32.mrf.mxu0
    %v780 = vadd.f32 0.0, %v779
    %781 = vmatmul.f32.gmra.mxu0 %v738
    %v782 = vpop.f32.mrf.mxu0
    %v783 = vadd.f32 0.0, %v782
    %784 = vmatmul.f32.gmra.mxu0 %v739
    %v785 = vpop.f32.mrf.mxu0
    %v786 = vadd.f32 0.0, %v785
    %787 = vmatmul.f32.gmra.mxu0 %v740
    %v788 = vpop.f32.mrf.mxu0
    %v789 = vadd.f32 0.0, %v788
    %790 = vmatmul.f32.gmra.mxu0 %v741
    %v791 = vpop.f32.mrf.mxu0
    %v792 = vadd.f32 0.0, %v791
    %793 = vmatmul.f32.gmra.mxu0 %v742
    %v794 = vpop.f32.mrf.mxu0
    %v795 = vadd.f32 0.0, %v794
    %796 = vmatmul.f32.gmra.mxu0 %v743
    %v797 = vpop.f32.mrf.mxu0
    %v798 = vadd.f32 0.0, %v797
    %799 = vmatmul.f32.gmra.mxu0 %v744
    %v800 = vpop.f32.mrf.mxu0
    %v801 = vadd.f32 0.0, %v800
    %802 = vdwg.mxu0
    %s803 = scalar_lea.vmem %s6, 1
    %v804 = vld [vmem:[%s803] sm:$0x1]
    %s805 = scalar_lea.vmem [#allocation12], 1
    %v806 = vld [vmem:[%s805] sm:$0x1]
    %v807 = vadd.f32 %v780, %v783
    %v808 = vadd.f32 %v807, %v786
    %v809 = vadd.f32 %v808, %v789
    %v810 = vadd.f32 %v809, %v792
    %v811 = vadd.f32 %v810, %v795
    %v812 = vadd.f32 %v811, %v798
    %v813 = vadd.f32 %v812, %v801
    %v814 = vrot.slane %v813, 4
    %v815 = vadd.f32 %v813, %v814
    %v816 = vrot.slane %v815, 2
    %v817 = vadd.f32 %v815, %v816
    %v818 = vrot.slane %v817, 1
    %v819 = vadd.f32 %v817, %v818
    %v820 = vmul.f32 %v819, 0.015625
    %v821 = vsub.f32 %v780, %v820
    %v822 = vsub.f32 %v783, %v820
    %v823 = vsub.f32 %v786, %v820
    %v824 = vsub.f32 %v789, %v820
    %v825 = vsub.f32 %v792, %v820
    %v826 = vsub.f32 %v795, %v820
    %v827 = vsub.f32 %v798, %v820
    %v828 = vsub.f32 %v801, %v820
    %v829 = vmul.f32 %v821, %v821
    %v830 = vmul.f32 %v822, %v822
    %v831 = vmul.f32 %v823, %v823
    %v832 = vmul.f32 %v824, %v824
    %v833 = vmul.f32 %v825, %v825
    %v834 = vmul.f32 %v826, %v826
    %v835 = vmul.f32 %v827, %v827
    %v836 = vmul.f32 %v828, %v828
    %v837 = vadd.f32 %v829, %v830
    %v838 = vadd.f32 %v837, %v831
    %v839 = vadd.f32 %v838, %v832
    %v840 = vadd.f32 %v839, %v833
    %v841 = vadd.f32 %v840, %v834
    %v842 = vadd.f32 %v841, %v835
    %v843 = vadd.f32 %v842, %v836
    %v844 = vrot.slane %v843, 4
    %v845 = vadd.f32 %v843, %v844
    %v846 = vrot.slane %v845, 2
    %v847 = vadd.f32 %v845, %v846
    %v848 = vrot.slane %v847, 1
    %v849 = vadd.f32 %v847, %v848
    %v850 = vmul.f32 %v849, 0.015625
    %v851 = vadd.f32 %v850, 1e-05
    %v852 = vrsqrt.pop %v851
    %v853 = vmul.f32 %v852, %v851
    %v854 = vmul.f32 %v853, %v852
    %v855 = vmul.f32 0.5, %v854
    %v856 = vsub.f32 1.5, %v855
    %v857 = vmul.f32 %v852, %v856
    %vm858 = vweird.f32 %v851
    %vm859 = vweird.f32 %v852
    %vm860 = vmor %vm858, %vm859
    %v861 = vsel %vm860, %v852, %v857
    %v862 = vmul.f32 %v804, %v861
    %v863 = vmul.f32 %v820, %v862
    %v864 = vsub.f32 %v806, %v863
    %v866 = vperm.slane %v862, 0
    %v868 = vmul.f32 %v780, %v866
    %v869 = vmul.f32 %v783, %v866
    %v870 = vmul.f32 %v786, %v866
    %v871 = vmul.f32 %v789, %v866
    %v872 = vmul.f32 %v792, %v866
    %v873 = vmul.f32 %v795, %v866
    %v874 = vmul.f32 %v798, %v866
    %v875 = vmul.f32 %v801, %v866
    %v877 = vperm.slane %v864, 0
    %v879 = vadd.f32 %v868, %v877
    %v880 = vadd.f32 %v869, %v877
    %v881 = vadd.f32 %v870, %v877
    %v882 = vadd.f32 %v871, %v877
    %v883 = vadd.f32 %v872, %v877
    %v884 = vadd.f32 %v873, %v877
    %v885 = vadd.f32 %v874, %v877
    %v886 = vadd.f32 %v875, %v877
    %v887 = vmul.f32 %v879, 0.01
    %v888 = vmul.f32 %v880, 0.01
    %v889 = vmul.f32 %v881, 0.01
    %v890 = vmul.f32 %v882, 0.01
    %v891 = vmul.f32 %v883, 0.01
    %v892 = vmul.f32 %v884, 0.01
    %v893 = vmul.f32 %v885, 0.01
    %v894 = vmul.f32 %v886, 0.01
    %v895 = vmax.f32 %v879, %v887
    %v896 = vmax.f32 %v880, %v888
    %v897 = vmax.f32 %v881, %v889
    %v898 = vmax.f32 %v882, %v890
    %v899 = vmax.f32 %v883, %v891
    %v900 = vmax.f32 %v884, %v892
    %v901 = vmax.f32 %v885, %v893
    %v902 = vmax.f32 %v886, %v894
    %903 = vst [vmem:[%s8 + $0x10] sm:$0xff] %v895
    %904 = vst [vmem:[%s8 + $0x38] sm:$0xff] %v896
    %905 = vst [vmem:[%s8 + $0x60] sm:$0xff] %v897
    %906 = vst [vmem:[%s8 + $0x88] sm:$0xff] %v898
    %907 = vst [vmem:[%s8 + $0xb0] sm:$0xff] %v899
    %908 = vst [vmem:[%s8 + $0xd8] sm:$0xff] %v900
    %909 = vst [vmem:[%s8 + $0x100] sm:$0xff] %v901
    %910 = vst [vmem:[%s8 + $0x128] sm:$0xff] %v902
    %911 = vmatpush.msra.mxu0 0.0
    %912 = vmatpush.msra.mxu0 0.0
    %913 = vmatpush.msra.mxu0 0.0
    %914 = vmatpush.msra.mxu0 0.0
    %915 = vmatpush.msra.mxu0 0.0
    %916 = vmatpush.msra.mxu0 0.0
    %917 = vmatpush.msra.mxu0 0.0
    %918 = vmatpush.msra.mxu0 0.0
    %919 = vmatpush.msra.mxu0 %v902
    %920 = vmatpush.msra.mxu0 %v901
    %921 = vmatpush.msra.mxu0 %v900
    %922 = vmatpush.msra.mxu0 %v899
    %923 = vmatpush.msra.mxu0 %v898
    %924 = vmatpush.msra.mxu0 %v897
    %925 = vmatpush.msra.mxu0 %v896
    %926 = vmatpush.msra.mxu0 %v895
    %927 = vmatmul.f32.gmra.mxu0 %v164
    %v928 = vpop.f32.mrf.mxu0
    %v929 = vadd.f32 0.0, %v928
    %930 = vmatmul.f32.gmra.mxu0 %v167
    %v931 = vpop.f32.mrf.mxu0
    %v932 = vadd.f32 0.0, %v931
    %933 = vmatmul.f32.gmra.mxu0 %v170
    %v934 = vpop.f32.mrf.mxu0
    %v935 = vadd.f32 0.0, %v934
    %936 = vmatmul.f32.gmra.mxu0 %v173
    %v937 = vpop.f32.mrf.mxu0
    %v938 = vadd.f32 0.0, %v937
    %939 = vmatmul.f32.gmra.mxu0 %v176
    %v940 = vpop.f32.mrf.mxu0
    %v941 = vadd.f32 0.0, %v940
    %942 = vmatmul.f32.gmra.mxu0 %v179
    %v943 = vpop.f32.mrf.mxu0
    %v944 = vadd.f32 0.0, %v943
    %945 = vmatmul.f32.gmra.mxu0 %v182
    %v946 = vpop.f32.mrf.mxu0
    %v947 = vadd.f32 0.0, %v946
    %948 = vmatmul.f32.gmra.mxu0 %v185
    %v949 = vpop.f32.mrf.mxu0
    %v950 = vadd.f32 0.0, %v949
    %951 = vdwg.mxu0
    %s952 = scalar_lea.vmem [#allocation6], 256
    %v953 = vld [vmem:[%s952] sm:$0xff]
    %v954 = vld [vmem:[%s952 + $0x8] sm:$0xff]
    %v955 = vld [vmem:[%s952 + $0x10] sm:$0xff]
    %v956 = vld [vmem:[%s952 + $0x18] sm:$0xff]
    %v957 = vld [vmem:[%s952 + $0x20] sm:$0xff]
    %v958 = vld [vmem:[%s952 + $0x28] sm:$0xff]
    %v959 = vld [vmem:[%s952 + $0x30] sm:$0xff]
    %v960 = vld [vmem:[%s952 + $0x38] sm:$0xff]
    %v961 = vld [vmem:[%s952 + $0x40] sm:$0xff]
    %v962 = vld [vmem:[%s952 + $0x48] sm:$0xff]
    %v963 = vld [vmem:[%s952 + $0x50] sm:$0xff]
    %v964 = vld [vmem:[%s952 + $0x58] sm:$0xff]
    %v965 = vld [vmem:[%s952 + $0x60] sm:$0xff]
    %v966 = vld [vmem:[%s952 + $0x68] sm:$0xff]
    %v967 = vld [vmem:[%s952 + $0x70] sm:$0xff]
    %v968 = vld [vmem:[%s952 + $0x78] sm:$0xff]
    %969 = vmatpush.msra.mxu0 %v968
    %970 = vmatpush.msra.mxu0 %v967
    %971 = vmatpush.msra.mxu0 %v966
    %972 = vmatpush.msra.mxu0 %v965
    %973 = vmatpush.msra.mxu0 %v964
    %974 = vmatpush.msra.mxu0 %v963
    %975 = vmatpush.msra.mxu0 %v962
    %976 = vmatpush.msra.mxu0 %v961
    %977 = vmatpush.msra.mxu0 %v960
    %978 = vmatpush.msra.mxu0 %v959
    %979 = vmatpush.msra.mxu0 %v958
    %980 = vmatpush.msra.mxu0 %v957
    %981 = vmatpush.msra.mxu0 %v956
    %982 = vmatpush.msra.mxu0 %v955
    %983 = vmatpush.msra.mxu0 %v954
    %984 = vmatpush.msra.mxu0 %v953
    %985 = vmatmul.f32.gmra.mxu0 %v929
    %v986 = vpop.f32.mrf.mxu0
    %v987 = vadd.f32 0.0, %v986
    %988 = vmatmul.f32.gmra.mxu0 %v932
    %v989 = vpop.f32.mrf.mxu0
    %v990 = vadd.f32 0.0, %v989
    %991 = vmatmul.f32.gmra.mxu0 %v935
    %v992 = vpop.f32.mrf.mxu0
    %v993 = vadd.f32 0.0, %v992
    %994 = vmatmul.f32.gmra.mxu0 %v938
    %v995 = vpop.f32.mrf.mxu0
    %v996 = vadd.f32 0.0, %v995
    %997 = vmatmul.f32.gmra.mxu0 %v941
    %v998 = vpop.f32.mrf.mxu0
    %v999 = vadd.f32 0.0, %v998
    %1000 = vmatmul.f32.gmra.mxu0 %v944
    %v1001 = vpop.f32.mrf.mxu0
    %v1002 = vadd.f32 0.0, %v1001
    %1003 = vmatmul.f32.gmra.mxu0 %v947
    %v1004 = vpop.f32.mrf.mxu0
    %v1005 = vadd.f32 0.0, %v1004
    %1006 = vmatmul.f32.gmra.mxu0 %v950
    %v1007 = vpop.f32.mrf.mxu0
    %v1008 = vadd.f32 0.0, %v1007
    %1009 = vdwg.mxu0
    %s1010 = scalar_lea.vmem [#allocation7], 2
    %v1011 = vld [vmem:[%s1010] sm:$0x1]
    %s1012 = scalar_lea.vmem [#allocation9], 2
    %v1013 = vld [vmem:[%s1012] sm:$0x1]
    %v1014 = vadd.f32 %v987, %v990
    %v1015 = vadd.f32 %v1014, %v993
    %v1016 = vadd.f32 %v1015, %v996
    %v1017 = vadd.f32 %v1016, %v999
    %v1018 = vadd.f32 %v1017, %v1002
    %v1019 = vadd.f32 %v1018, %v1005
    %v1020 = vadd.f32 %v1019, %v1008
    %v1021 = vrot.slane %v1020, 4
    %v1022 = vadd.f32 %v1020, %v1021
    %v1023 = vrot.slane %v1022, 2
    %v1024 = vadd.f32 %v1022, %v1023
    %v1025 = vrot.slane %v1024, 1
    %v1026 = vadd.f32 %v1024, %v1025
    %v1027 = vmul.f32 %v1026, 0.015625
    %v1028 = vsub.f32 %v987, %v1027
    %v1029 = vsub.f32 %v990, %v1027
    %v1030 = vsub.f32 %v993, %v1027
    %v1031 = vsub.f32 %v996, %v1027
    %v1032 = vsub.f32 %v999, %v1027
    %v1033 = vsub.f32 %v1002, %v1027
    %v1034 = vsub.f32 %v1005, %v1027
    %v1035 = vsub.f32 %v1008, %v1027
    %v1036 = vmul.f32 %v1028, %v1028
    %v1037 = vmul.f32 %v1029, %v1029
    %v1038 = vmul.f32 %v1030, %v1030
    %v1039 = vmul.f32 %v1031, %v1031
    %v1040 = vmul.f32 %v1032, %v1032
    %v1041 = vmul.f32 %v1033, %v1033
    %v1042 = vmul.f32 %v1034, %v1034
    %v1043 = vmul.f32 %v1035, %v1035
    %v1044 = vadd.f32 %v1036, %v1037
    %v1045 = vadd.f32 %v1044, %v1038
    %v1046 = vadd.f32 %v1045, %v1039
    %v1047 = vadd.f32 %v1046, %v1040
    %v1048 = vadd.f32 %v1047, %v1041
    %v1049 = vadd.f32 %v1048, %v1042
    %v1050 = vadd.f32 %v1049, %v1043
    %v1051 = vrot.slane %v1050, 4
    %v1052 = vadd.f32 %v1050, %v1051
    %v1053 = vrot.slane %v1052, 2
    %v1054 = vadd.f32 %v1052, %v1053
    %v1055 = vrot.slane %v1054, 1
    %v1056 = vadd.f32 %v1054, %v1055
    %v1057 = vmul.f32 %v1056, 0.015625
    %v1058 = vadd.f32 %v1057, 1e-05
    %v1059 = vrsqrt.pop %v1058
    %v1060 = vmul.f32 %v1059, %v1058
    %v1061 = vmul.f32 %v1060, %v1059
    %v1062 = vmul.f32 0.5, %v1061
    %v1063 = vsub.f32 1.5, %v1062
    %v1064 = vmul.f32 %v1059, %v1063
    %vm1065 = vweird.f32 %v1058
    %vm1066 = vweird.f32 %v1059
    %vm1067 = vmor %vm1065, %vm1066
    %v1068 = vsel %vm1067, %v1059, %v1064
    %v1069 = vmul.f32 %v1011, %v1068
    %v1070 = vmul.f32 %v1027, %v1069
    %v1071 = vsub.f32 %v1013, %v1070
    %v1073 = vperm.slane %v1069, 0
    %v1075 = vmul.f32 %v987, %v1073
    %v1076 = vmul.f32 %v990, %v1073
    %v1077 = vmul.f32 %v993, %v1073
    %v1078 = vmul.f32 %v996, %v1073
    %v1079 = vmul.f32 %v999, %v1073
    %v1080 = vmul.f32 %v1002, %v1073
    %v1081 = vmul.f32 %v1005, %v1073
    %v1082 = vmul.f32 %v1008, %v1073
    %v1084 = vperm.slane %v1071, 0
    %v1086 = vadd.f32 %v1075, %v1084
    %v1087 = vadd.f32 %v1076, %v1084
    %v1088 = vadd.f32 %v1077, %v1084
    %v1089 = vadd.f32 %v1078, %v1084
    %v1090 = vadd.f32 %v1079, %v1084
    %v1091 = vadd.f32 %v1080, %v1084
    %v1092 = vadd.f32 %v1081, %v1084
    %v1093 = vadd.f32 %v1082, %v1084
    %v1094 = vmul.f32 %v1086, 0.01
    %v1095 = vmul.f32 %v1087, 0.01
    %v1096 = vmul.f32 %v1088, 0.01
    %v1097 = vmul.f32 %v1089, 0.01
    %v1098 = vmul.f32 %v1090, 0.01
    %v1099 = vmul.f32 %v1091, 0.01
    %v1100 = vmul.f32 %v1092, 0.01
    %v1101 = vmul.f32 %v1093, 0.01
    %v1102 = vmax.f32 %v1086, %v1094
    %v1103 = vmax.f32 %v1087, %v1095
    %v1104 = vmax.f32 %v1088, %v1096
    %v1105 = vmax.f32 %v1089, %v1097
    %v1106 = vmax.f32 %v1090, %v1098
    %v1107 = vmax.f32 %v1091, %v1099
    %v1108 = vmax.f32 %v1092, %v1100
    %v1109 = vmax.f32 %v1093, %v1101
    %s1110 = scalar_lea.vmem [#allocation10], 256
    %v1111 = vld [vmem:[%s1110] sm:$0xff]
    %v1112 = vld [vmem:[%s1110 + $0x8] sm:$0xff]
    %v1113 = vld [vmem:[%s1110 + $0x10] sm:$0xff]
    %v1114 = vld [vmem:[%s1110 + $0x18] sm:$0xff]
    %v1115 = vld [vmem:[%s1110 + $0x20] sm:$0xff]
    %v1116 = vld [vmem:[%s1110 + $0x28] sm:$0xff]
    %v1117 = vld [vmem:[%s1110 + $0x30] sm:$0xff]
    %v1118 = vld [vmem:[%s1110 + $0x38] sm:$0xff]
    %v1119 = vld [vmem:[%s1110 + $0x40] sm:$0xff]
    %v1120 = vld [vmem:[%s1110 + $0x48] sm:$0xff]
    %v1121 = vld [vmem:[%s1110 + $0x50] sm:$0xff]
    %v1122 = vld [vmem:[%s1110 + $0x58] sm:$0xff]
    %v1123 = vld [vmem:[%s1110 + $0x60] sm:$0xff]
    %v1124 = vld [vmem:[%s1110 + $0x68] sm:$0xff]
    %v1125 = vld [vmem:[%s1110 + $0x70] sm:$0xff]
    %v1126 = vld [vmem:[%s1110 + $0x78] sm:$0xff]
    %1127 = vmatpush.msra.mxu0 %v1126
    %1128 = vmatpush.msra.mxu0 %v1125
    %1129 = vmatpush.msra.mxu0 %v1124
    %1130 = vmatpush.msra.mxu0 %v1123
    %1131 = vmatpush.msra.mxu0 %v1122
    %1132 = vmatpush.msra.mxu0 %v1121
    %1133 = vmatpush.msra.mxu0 %v1120
    %1134 = vmatpush.msra.mxu0 %v1119
    %1135 = vmatpush.msra.mxu0 %v1118
    %1136 = vmatpush.msra.mxu0 %v1117
    %1137 = vmatpush.msra.mxu0 %v1116
    %1138 = vmatpush.msra.mxu0 %v1115
    %1139 = vmatpush.msra.mxu0 %v1114
    %1140 = vmatpush.msra.mxu0 %v1113
    %1141 = vmatpush.msra.mxu0 %v1112
    %1142 = vmatpush.msra.mxu0 %v1111
    %1143 = vmatmul.f32.gmra.mxu0 %v1102
    %v1144 = vpop.f32.mrf.mxu0
    %v1145 = vadd.f32 0.0, %v1144
    %1146 = vmatmul.f32.gmra.mxu0 %v1103
    %v1147 = vpop.f32.mrf.mxu0
    %v1148 = vadd.f32 0.0, %v1147
    %1149 = vmatmul.f32.gmra.mxu0 %v1104
    %v1150 = vpop.f32.mrf.mxu0
    %v1151 = vadd.f32 0.0, %v1150
    %1152 = vmatmul.f32.gmra.mxu0 %v1105
    %v1153 = vpop.f32.mrf.mxu0
    %v1154 = vadd.f32 0.0, %v1153
    %1155 = vmatmul.f32.gmra.mxu0 %v1106
    %v1156 = vpop.f32.mrf.mxu0
    %v1157 = vadd.f32 0.0, %v1156
    %1158 = vmatmul.f32.gmra.mxu0 %v1107
    %v1159 = vpop.f32.mrf.mxu0
    %v1160 = vadd.f32 0.0, %v1159
    %1161 = vmatmul.f32.gmra.mxu0 %v1108
    %v1162 = vpop.f32.mrf.mxu0
    %v1163 = vadd.f32 0.0, %v1162
    %1164 = vmatmul.f32.gmra.mxu0 %v1109
    %v1165 = vpop.f32.mrf.mxu0
    %v1166 = vadd.f32 0.0, %v1165
    %1167 = vdwg.mxu0
    %s1168 = scalar_lea.vmem %s6, 2
    %v1169 = vld [vmem:[%s1168] sm:$0x1]
    %s1170 = scalar_lea.vmem [#allocation12], 2
    %v1171 = vld [vmem:[%s1170] sm:$0x1]
    %v1172 = vadd.f32 %v1145, %v1148
    %v1173 = vadd.f32 %v1172, %v1151
    %v1174 = vadd.f32 %v1173, %v1154
    %v1175 = vadd.f32 %v1174, %v1157
    %v1176 = vadd.f32 %v1175, %v1160
    %v1177 = vadd.f32 %v1176, %v1163
    %v1178 = vadd.f32 %v1177, %v1166
    %v1179 = vrot.slane %v1178, 4
    %v1180 = vadd.f32 %v1178, %v1179
    %v1181 = vrot.slane %v1180, 2
    %v1182 = vadd.f32 %v1180, %v1181
    %v1183 = vrot.slane %v1182, 1
    %v1184 = vadd.f32 %v1182, %v1183
    %v1185 = vmul.f32 %v1184, 0.015625
    %v1186 = vsub.f32 %v1145, %v1185
    %v1187 = vsub.f32 %v1148, %v1185
    %v1188 = vsub.f32 %v1151, %v1185
    %v1189 = vsub.f32 %v1154, %v1185
    %v1190 = vsub.f32 %v1157, %v1185
    %v1191 = vsub.f32 %v1160, %v1185
    %v1192 = vsub.f32 %v1163, %v1185
    %v1193 = vsub.f32 %v1166, %v1185
    %v1194 = vmul.f32 %v1186, %v1186
    %v1195 = vmul.f32 %v1187, %v1187
    %v1196 = vmul.f32 %v1188, %v1188
    %v1197 = vmul.f32 %v1189, %v1189
    %v1198 = vmul.f32 %v1190, %v1190
    %v1199 = vmul.f32 %v1191, %v1191
    %v1200 = vmul.f32 %v1192, %v1192
    %v1201 = vmul.f32 %v1193, %v1193
    %v1202 = vadd.f32 %v1194, %v1195
    %v1203 = vadd.f32 %v1202, %v1196
    %v1204 = vadd.f32 %v1203, %v1197
    %v1205 = vadd.f32 %v1204, %v1198
    %v1206 = vadd.f32 %v1205, %v1199
    %v1207 = vadd.f32 %v1206, %v1200
    %v1208 = vadd.f32 %v1207, %v1201
    %v1209 = vrot.slane %v1208, 4
    %v1210 = vadd.f32 %v1208, %v1209
    %v1211 = vrot.slane %v1210, 2
    %v1212 = vadd.f32 %v1210, %v1211
    %v1213 = vrot.slane %v1212, 1
    %v1214 = vadd.f32 %v1212, %v1213
    %v1215 = vmul.f32 %v1214, 0.015625
    %v1216 = vadd.f32 %v1215, 1e-05
    %v1217 = vrsqrt.pop %v1216
    %v1218 = vmul.f32 %v1217, %v1216
    %v1219 = vmul.f32 %v1218, %v1217
    %v1220 = vmul.f32 0.5, %v1219
    %v1221 = vsub.f32 1.5, %v1220
    %v1222 = vmul.f32 %v1217, %v1221
    %vm1223 = vweird.f32 %v1216
    %vm1224 = vweird.f32 %v1217
    %vm1225 = vmor %vm1223, %vm1224
    %v1226 = vsel %vm1225, %v1217, %v1222
    %v1227 = vmul.f32 %v1169, %v1226
    %v1228 = vmul.f32 %v1185, %v1227
    %v1229 = vsub.f32 %v1171, %v1228
    %v1231 = vperm.slane %v1227, 0
    %v1233 = vmul.f32 %v1145, %v1231
    %v1234 = vmul.f32 %v1148, %v1231
    %v1235 = vmul.f32 %v1151, %v1231
    %v1236 = vmul.f32 %v1154, %v1231
    %v1237 = vmul.f32 %v1157, %v1231
    %v1238 = vmul.f32 %v1160, %v1231
    %v1239 = vmul.f32 %v1163, %v1231
    %v1240 = vmul.f32 %v1166, %v1231
    %v1242 = vperm.slane %v1229, 0
    %v1244 = vadd.f32 %v1233, %v1242
    %v1245 = vadd.f32 %v1234, %v1242
    %v1246 = vadd.f32 %v1235, %v1242
    %v1247 = vadd.f32 %v1236, %v1242
    %v1248 = vadd.f32 %v1237, %v1242
    %v1249 = vadd.f32 %v1238, %v1242
    %v1250 = vadd.f32 %v1239, %v1242
    %v1251 = vadd.f32 %v1240, %v1242
    %v1252 = vmul.f32 %v1244, 0.01
    %v1253 = vmul.f32 %v1245, 0.01
    %v1254 = vmul.f32 %v1246, 0.01
    %v1255 = vmul.f32 %v1247, 0.01
    %v1256 = vmul.f32 %v1248, 0.01
    %v1257 = vmul.f32 %v1249, 0.01
    %v1258 = vmul.f32 %v1250, 0.01
    %v1259 = vmul.f32 %v1251, 0.01
    %v1260 = vmax.f32 %v1244, %v1252
    %v1261 = vmax.f32 %v1245, %v1253
    %v1262 = vmax.f32 %v1246, %v1254
    %v1263 = vmax.f32 %v1247, %v1255
    %v1264 = vmax.f32 %v1248, %v1256
    %v1265 = vmax.f32 %v1249, %v1257
    %v1266 = vmax.f32 %v1250, %v1258
    %v1267 = vmax.f32 %v1251, %v1259
    %1268 = vst [vmem:[%s8 + $0x18] sm:$0xff] %v1260
    %1269 = vst [vmem:[%s8 + $0x40] sm:$0xff] %v1261
    %1270 = vst [vmem:[%s8 + $0x68] sm:$0xff] %v1262
    %1271 = vst [vmem:[%s8 + $0x90] sm:$0xff] %v1263
    %1272 = vst [vmem:[%s8 + $0xb8] sm:$0xff] %v1264
    %1273 = vst [vmem:[%s8 + $0xe0] sm:$0xff] %v1265
    %1274 = vst [vmem:[%s8 + $0x108] sm:$0xff] %v1266
    %1275 = vst [vmem:[%s8 + $0x130] sm:$0xff] %v1267
    %1276 = vmatpush.msra.mxu0 0.0
    %1277 = vmatpush.msra.mxu0 0.0
    %1278 = vmatpush.msra.mxu0 0.0
    %1279 = vmatpush.msra.mxu0 0.0
    %1280 = vmatpush.msra.mxu0 0.0
    %1281 = vmatpush.msra.mxu0 0.0
    %1282 = vmatpush.msra.mxu0 0.0
    %1283 = vmatpush.msra.mxu0 0.0
    %1284 = vmatpush.msra.mxu0 %v1267
    %1285 = vmatpush.msra.mxu0 %v1266
    %1286 = vmatpush.msra.mxu0 %v1265
    %1287 = vmatpush.msra.mxu0 %v1264
    %1288 = vmatpush.msra.mxu0 %v1263
    %1289 = vmatpush.msra.mxu0 %v1262
    %1290 = vmatpush.msra.mxu0 %v1261
    %1291 = vmatpush.msra.mxu0 %v1260
    %1292 = vmatmul.f32.gmra.mxu0 %v164
    %v1293 = vpop.f32.mrf.mxu0
    %v1294 = vadd.f32 0.0, %v1293
    %1295 = vmatmul.f32.gmra.mxu0 %v167
    %v1296 = vpop.f32.mrf.mxu0
    %v1297 = vadd.f32 0.0, %v1296
    %1298 = vmatmul.f32.gmra.mxu0 %v170
    %v1299 = vpop.f32.mrf.mxu0
    %v1300 = vadd.f32 0.0, %v1299
    %1301 = vmatmul.f32.gmra.mxu0 %v173
    %v1302 = vpop.f32.mrf.mxu0
    %v1303 = vadd.f32 0.0, %v1302
    %1304 = vmatmul.f32.gmra.mxu0 %v176
    %v1305 = vpop.f32.mrf.mxu0
    %v1306 = vadd.f32 0.0, %v1305
    %1307 = vmatmul.f32.gmra.mxu0 %v179
    %v1308 = vpop.f32.mrf.mxu0
    %v1309 = vadd.f32 0.0, %v1308
    %1310 = vmatmul.f32.gmra.mxu0 %v182
    %v1311 = vpop.f32.mrf.mxu0
    %v1312 = vadd.f32 0.0, %v1311
    %1313 = vmatmul.f32.gmra.mxu0 %v185
    %v1314 = vpop.f32.mrf.mxu0
    %v1315 = vadd.f32 0.0, %v1314
    %1316 = vdwg.mxu0
    %s1317 = scalar_lea.vmem [#allocation6], 384
    %v1318 = vld [vmem:[%s1317] sm:$0xff]
    %v1319 = vld [vmem:[%s1317 + $0x8] sm:$0xff]
    %v1320 = vld [vmem:[%s1317 + $0x10] sm:$0xff]
    %v1321 = vld [vmem:[%s1317 + $0x18] sm:$0xff]
    %v1322 = vld [vmem:[%s1317 + $0x20] sm:$0xff]
    %v1323 = vld [vmem:[%s1317 + $0x28] sm:$0xff]
    %v1324 = vld [vmem:[%s1317 + $0x30] sm:$0xff]
    %v1325 = vld [vmem:[%s1317 + $0x38] sm:$0xff]
    %v1326 = vld [vmem:[%s1317 + $0x40] sm:$0xff]
    %v1327 = vld [vmem:[%s1317 + $0x48] sm:$0xff]
    %v1328 = vld [vmem:[%s1317 + $0x50] sm:$0xff]
    %v1329 = vld [vmem:[%s1317 + $0x58] sm:$0xff]
    %v1330 = vld [vmem:[%s1317 + $0x60] sm:$0xff]
    %v1331 = vld [vmem:[%s1317 + $0x68] sm:$0xff]
    %v1332 = vld [vmem:[%s1317 + $0x70] sm:$0xff]
    %v1333 = vld [vmem:[%s1317 + $0x78] sm:$0xff]
    %1334 = vmatpush.msra.mxu0 %v1333
    %1335 = vmatpush.msra.mxu0 %v1332
    %1336 = vmatpush.msra.mxu0 %v1331
    %1337 = vmatpush.msra.mxu0 %v1330
    %1338 = vmatpush.msra.mxu0 %v1329
    %1339 = vmatpush.msra.mxu0 %v1328
    %1340 = vmatpush.msra.mxu0 %v1327
    %1341 = vmatpush.msra.mxu0 %v1326
    %1342 = vmatpush.msra.mxu0 %v1325
    %1343 = vmatpush.msra.mxu0 %v1324
    %1344 = vmatpush.msra.mxu0 %v1323
    %1345 = vmatpush.msra.mxu0 %v1322
    %1346 = vmatpush.msra.mxu0 %v1321
    %1347 = vmatpush.msra.mxu0 %v1320
    %1348 = vmatpush.msra.mxu0 %v1319
    %1349 = vmatpush.msra.mxu0 %v1318
    %1350 = vmatmul.f32.gmra.mxu0 %v1294
    %v1351 = vpop.f32.mrf.mxu0
    %v1352 = vadd.f32 0.0, %v1351
    %1353 = vmatmul.f32.gmra.mxu0 %v1297
    %v1354 = vpop.f32.mrf.mxu0
    %v1355 = vadd.f32 0.0, %v1354
    %1356 = vmatmul.f32.gmra.mxu0 %v1300
    %v1357 = vpop.f32.mrf.mxu0
    %v1358 = vadd.f32 0.0, %v1357
    %1359 = vmatmul.f32.gmra.mxu0 %v1303
    %v1360 = vpop.f32.mrf.mxu0
    %v1361 = vadd.f32 0.0, %v1360
    %1362 = vmatmul.f32.gmra.mxu0 %v1306
    %v1363 = vpop.f32.mrf.mxu0
    %v1364 = vadd.f32 0.0, %v1363
    %1365 = vmatmul.f32.gmra.mxu0 %v1309
    %v1366 = vpop.f32.mrf.mxu0
    %v1367 = vadd.f32 0.0, %v1366
    %1368 = vmatmul.f32.gmra.mxu0 %v1312
    %v1369 = vpop.f32.mrf.mxu0
    %v1370 = vadd.f32 0.0, %v1369
    %1371 = vmatmul.f32.gmra.mxu0 %v1315
    %v1372 = vpop.f32.mrf.mxu0
    %v1373 = vadd.f32 0.0, %v1372
    %1374 = vdwg.mxu0
    %s1375 = scalar_lea.vmem [#allocation7], 3
    %v1376 = vld [vmem:[%s1375] sm:$0x1]
    %s1377 = scalar_lea.vmem [#allocation9], 3
    %v1378 = vld [vmem:[%s1377] sm:$0x1]
    %v1379 = vadd.f32 %v1352, %v1355
    %v1380 = vadd.f32 %v1379, %v1358
    %v1381 = vadd.f32 %v1380, %v1361
    %v1382 = vadd.f32 %v1381, %v1364
    %v1383 = vadd.f32 %v1382, %v1367
    %v1384 = vadd.f32 %v1383, %v1370
    %v1385 = vadd.f32 %v1384, %v1373
    %v1386 = vrot.slane %v1385, 4
    %v1387 = vadd.f32 %v1385, %v1386
    %v1388 = vrot.slane %v1387, 2
    %v1389 = vadd.f32 %v1387, %v1388
    %v1390 = vrot.slane %v1389, 1
    %v1391 = vadd.f32 %v1389, %v1390
    %v1392 = vmul.f32 %v1391, 0.015625
    %v1393 = vsub.f32 %v1352, %v1392
    %v1394 = vsub.f32 %v1355, %v1392
    %v1395 = vsub.f32 %v1358, %v1392
    %v1396 = vsub.f32 %v1361, %v1392
    %v1397 = vsub.f32 %v1364, %v1392
    %v1398 = vsub.f32 %v1367, %v1392
    %v1399 = vsub.f32 %v1370, %v1392
    %v1400 = vsub.f32 %v1373, %v1392
    %v1401 = vmul.f32 %v1393, %v1393
    %v1402 = vmul.f32 %v1394, %v1394
    %v1403 = vmul.f32 %v1395, %v1395
    %v1404 = vmul.f32 %v1396, %v1396
    %v1405 = vmul.f32 %v1397, %v1397
    %v1406 = vmul.f32 %v1398, %v1398
    %v1407 = vmul.f32 %v1399, %v1399
    %v1408 = vmul.f32 %v1400, %v1400
    %v1409 = vadd.f32 %v1401, %v1402
    %v1410 = vadd.f32 %v1409, %v1403
    %v1411 = vadd.f32 %v1410, %v1404
    %v1412 = vadd.f32 %v1411, %v1405
    %v1413 = vadd.f32 %v1412, %v1406
    %v1414 = vadd.f32 %v1413, %v1407
    %v1415 = vadd.f32 %v1414, %v1408
    %v1416 = vrot.slane %v1415, 4
    %v1417 = vadd.f32 %v1415, %v1416
    %v1418 = vrot.slane %v1417, 2
    %v1419 = vadd.f32 %v1417, %v1418
    %v1420 = vrot.slane %v1419, 1
    %v1421 = vadd.f32 %v1419, %v1420
    %v1422 = vmul.f32 %v1421, 0.015625
    %v1423 = vadd.f32 %v1422, 1e-05
    %v1424 = vrsqrt.pop %v1423
    %v1425 = vmul.f32 %v1424, %v1423
    %v1426 = vmul.f32 %v1425, %v1424
    %v1427 = vmul.f32 0.5, %v1426
    %v1428 = vsub.f32 1.5, %v1427
    %v1429 = vmul.f32 %v1424, %v1428
    %vm1430 = vweird.f32 %v1423
    %vm1431 = vweird.f32 %v1424
    %vm1432 = vmor %vm1430, %vm1431
    %v1433 = vsel %vm1432, %v1424, %v1429
    %v1434 = vmul.f32 %v1376, %v1433
    %v1435 = vmul.f32 %v1392, %v1434
    %v1436 = vsub.f32 %v1378, %v1435
    %v1438 = vperm.slane %v1434, 0
    %v1440 = vmul.f32 %v1352, %v1438
    %v1441 = vmul.f32 %v1355, %v1438
    %v1442 = vmul.f32 %v1358, %v1438
    %v1443 = vmul.f32 %v1361, %v1438
    %v1444 = vmul.f32 %v1364, %v1438
    %v1445 = vmul.f32 %v1367, %v1438
    %v1446 = vmul.f32 %v1370, %v1438
    %v1447 = vmul.f32 %v1373, %v1438
    %v1449 = vperm.slane %v1436, 0
    %v1451 = vadd.f32 %v1440, %v1449
    %v1452 = vadd.f32 %v1441, %v1449
    %v1453 = vadd.f32 %v1442, %v1449
    %v1454 = vadd.f32 %v1443, %v1449
    %v1455 = vadd.f32 %v1444, %v1449
    %v1456 = vadd.f32 %v1445, %v1449
    %v1457 = vadd.f32 %v1446, %v1449
    %v1458 = vadd.f32 %v1447, %v1449
    %v1459 = vmul.f32 %v1451, 0.01
    %v1460 = vmul.f32 %v1452, 0.01
    %v1461 = vmul.f32 %v1453, 0.01
    %v1462 = vmul.f32 %v1454, 0.01
    %v1463 = vmul.f32 %v1455, 0.01
    %v1464 = vmul.f32 %v1456, 0.01
    %v1465 = vmul.f32 %v1457, 0.01
    %v1466 = vmul.f32 %v1458, 0.01
    %v1467 = vmax.f32 %v1451, %v1459
    %v1468 = vmax.f32 %v1452, %v1460
    %v1469 = vmax.f32 %v1453, %v1461
    %v1470 = vmax.f32 %v1454, %v1462
    %v1471 = vmax.f32 %v1455, %v1463
    %v1472 = vmax.f32 %v1456, %v1464
    %v1473 = vmax.f32 %v1457, %v1465
    %v1474 = vmax.f32 %v1458, %v1466
    %s1475 = scalar_lea.vmem [#allocation10], 384
    %v1476 = vld [vmem:[%s1475] sm:$0xff]
    %v1477 = vld [vmem:[%s1475 + $0x8] sm:$0xff]
    %v1478 = vld [vmem:[%s1475 + $0x10] sm:$0xff]
    %v1479 = vld [vmem:[%s1475 + $0x18] sm:$0xff]
    %v1480 = vld [vmem:[%s1475 + $0x20] sm:$0xff]
    %v1481 = vld [vmem:[%s1475 + $0x28] sm:$0xff]
    %v1482 = vld [vmem:[%s1475 + $0x30] sm:$0xff]
    %v1483 = vld [vmem:[%s1475 + $0x38] sm:$0xff]
    %v1484 = vld [vmem:[%s1475 + $0x40] sm:$0xff]
    %v1485 = vld [vmem:[%s1475 + $0x48] sm:$0xff]
    %v1486 = vld [vmem:[%s1475 + $0x50] sm:$0xff]
    %v1487 = vld [vmem:[%s1475 + $0x58] sm:$0xff]
    %v1488 = vld [vmem:[%s1475 + $0x60] sm:$0xff]
    %v1489 = vld [vmem:[%s1475 + $0x68] sm:$0xff]
    %v1490 = vld [vmem:[%s1475 + $0x70] sm:$0xff]
    %v1491 = vld [vmem:[%s1475 + $0x78] sm:$0xff]
    %1492 = vmatpush.msra.mxu0 %v1491
    %1493 = vmatpush.msra.mxu0 %v1490
    %1494 = vmatpush.msra.mxu0 %v1489
    %1495 = vmatpush.msra.mxu0 %v1488
    %1496 = vmatpush.msra.mxu0 %v1487
    %1497 = vmatpush.msra.mxu0 %v1486
    %1498 = vmatpush.msra.mxu0 %v1485
    %1499 = vmatpush.msra.mxu0 %v1484
    %1500 = vmatpush.msra.mxu0 %v1483
    %1501 = vmatpush.msra.mxu0 %v1482
    %1502 = vmatpush.msra.mxu0 %v1481
    %1503 = vmatpush.msra.mxu0 %v1480
    %1504 = vmatpush.msra.mxu0 %v1479
    %1505 = vmatpush.msra.mxu0 %v1478
    %1506 = vmatpush.msra.mxu0 %v1477
    %1507 = vmatpush.msra.mxu0 %v1476
    %1508 = vmatmul.f32.gmra.mxu0 %v1467
    %v1509 = vpop.f32.mrf.mxu0
    %v1510 = vadd.f32 0.0, %v1509
    %1511 = vmatmul.f32.gmra.mxu0 %v1468
    %v1512 = vpop.f32.mrf.mxu0
    %v1513 = vadd.f32 0.0, %v1512
    %1514 = vmatmul.f32.gmra.mxu0 %v1469
    %v1515 = vpop.f32.mrf.mxu0
    %v1516 = vadd.f32 0.0, %v1515
    %1517 = vmatmul.f32.gmra.mxu0 %v1470
    %v1518 = vpop.f32.mrf.mxu0
    %v1519 = vadd.f32 0.0, %v1518
    %1520 = vmatmul.f32.gmra.mxu0 %v1471
    %v1521 = vpop.f32.mrf.mxu0
    %v1522 = vadd.f32 0.0, %v1521
    %1523 = vmatmul.f32.gmra.mxu0 %v1472
    %v1524 = vpop.f32.mrf.mxu0
    %v1525 = vadd.f32 0.0, %v1524
    %1526 = vmatmul.f32.gmra.mxu0 %v1473
    %v1527 = vpop.f32.mrf.mxu0
    %v1528 = vadd.f32 0.0, %v1527
    %1529 = vmatmul.f32.gmra.mxu0 %v1474
    %v1530 = vpop.f32.mrf.mxu0
    %v1531 = vadd.f32 0.0, %v1530
    %1532 = vdwg.mxu0
    %s1533 = scalar_lea.vmem %s6, 3
    %v1534 = vld [vmem:[%s1533] sm:$0x1]
    %s1535 = scalar_lea.vmem [#allocation12], 3
    %v1536 = vld [vmem:[%s1535] sm:$0x1]
    %v1537 = vadd.f32 %v1510, %v1513
    %v1538 = vadd.f32 %v1537, %v1516
    %v1539 = vadd.f32 %v1538, %v1519
    %v1540 = vadd.f32 %v1539, %v1522
    %v1541 = vadd.f32 %v1540, %v1525
    %v1542 = vadd.f32 %v1541, %v1528
    %v1543 = vadd.f32 %v1542, %v1531
    %v1544 = vrot.slane %v1543, 4
    %v1545 = vadd.f32 %v1543, %v1544
    %v1546 = vrot.slane %v1545, 2
    %v1547 = vadd.f32 %v1545, %v1546
    %v1548 = vrot.slane %v1547, 1
    %v1549 = vadd.f32 %v1547, %v1548
    %v1550 = vmul.f32 %v1549, 0.015625
    %v1551 = vsub.f32 %v1510, %v1550
    %v1552 = vsub.f32 %v1513, %v1550
    %v1553 = vsub.f32 %v1516, %v1550
    %v1554 = vsub.f32 %v1519, %v1550
    %v1555 = vsub.f32 %v1522, %v1550
    %v1556 = vsub.f32 %v1525, %v1550
    %v1557 = vsub.f32 %v1528, %v1550
    %v1558 = vsub.f32 %v1531, %v1550
    %v1559 = vmul.f32 %v1551, %v1551
    %v1560 = vmul.f32 %v1552, %v1552
    %v1561 = vmul.f32 %v1553, %v1553
    %v1562 = vmul.f32 %v1554, %v1554
    %v1563 = vmul.f32 %v1555, %v1555
    %v1564 = vmul.f32 %v1556, %v1556
    %v1565 = vmul.f32 %v1557, %v1557
    %v1566 = vmul.f32 %v1558, %v1558
    %v1567 = vadd.f32 %v1559, %v1560
    %v1568 = vadd.f32 %v1567, %v1561
    %v1569 = vadd.f32 %v1568, %v1562
    %v1570 = vadd.f32 %v1569, %v1563
    %v1571 = vadd.f32 %v1570, %v1564
    %v1572 = vadd.f32 %v1571, %v1565
    %v1573 = vadd.f32 %v1572, %v1566
    %v1574 = vrot.slane %v1573, 4
    %v1575 = vadd.f32 %v1573, %v1574
    %v1576 = vrot.slane %v1575, 2
    %v1577 = vadd.f32 %v1575, %v1576
    %v1578 = vrot.slane %v1577, 1
    %v1579 = vadd.f32 %v1577, %v1578
    %v1580 = vmul.f32 %v1579, 0.015625
    %v1581 = vadd.f32 %v1580, 1e-05
    %v1582 = vrsqrt.pop %v1581
    %v1583 = vmul.f32 %v1582, %v1581
    %v1584 = vmul.f32 %v1583, %v1582
    %v1585 = vmul.f32 0.5, %v1584
    %v1586 = vsub.f32 1.5, %v1585
    %v1587 = vmul.f32 %v1582, %v1586
    %vm1588 = vweird.f32 %v1581
    %vm1589 = vweird.f32 %v1582
    %vm1590 = vmor %vm1588, %vm1589
    %v1591 = vsel %vm1590, %v1582, %v1587
    %v1592 = vmul.f32 %v1534, %v1591
    %v1593 = vmul.f32 %v1550, %v1592
    %v1594 = vsub.f32 %v1536, %v1593
    %v1596 = vperm.slane %v1592, 0
    %v1598 = vmul.f32 %v1510, %v1596
    %v1599 = vmul.f32 %v1513, %v1596
    %v1600 = vmul.f32 %v1516, %v1596
    %v1601 = vmul.f32 %v1519, %v1596
    %v1602 = vmul.f32 %v1522, %v1596
    %v1603 = vmul.f32 %v1525, %v1596
    %v1604 = vmul.f32 %v1528, %v1596
    %v1605 = vmul.f32 %v1531, %v1596
    %v1607 = vperm.slane %v1594, 0
    %v1609 = vadd.f32 %v1598, %v1607
    %v1610 = vadd.f32 %v1599, %v1607
    %v1611 = vadd.f32 %v1600, %v1607
    %v1612 = vadd.f32 %v1601, %v1607
    %v1613 = vadd.f32 %v1602, %v1607
    %v1614 = vadd.f32 %v1603, %v1607
    %v1615 = vadd.f32 %v1604, %v1607
    %v1616 = vadd.f32 %v1605, %v1607
    %v1617 = vmul.f32 %v1609, 0.01
    %v1618 = vmul.f32 %v1610, 0.01
    %v1619 = vmul.f32 %v1611, 0.01
    %v1620 = vmul.f32 %v1612, 0.01
    %v1621 = vmul.f32 %v1613, 0.01
    %v1622 = vmul.f32 %v1614, 0.01
    %v1623 = vmul.f32 %v1615, 0.01
    %v1624 = vmul.f32 %v1616, 0.01
    %v1625 = vmax.f32 %v1609, %v1617
    %v1626 = vmax.f32 %v1610, %v1618
    %v1627 = vmax.f32 %v1611, %v1619
    %v1628 = vmax.f32 %v1612, %v1620
    %v1629 = vmax.f32 %v1613, %v1621
    %v1630 = vmax.f32 %v1614, %v1622
    %v1631 = vmax.f32 %v1615, %v1623
    %v1632 = vmax.f32 %v1616, %v1624
    %1633 = vst [vmem:[%s8 + $0x20] sm:$0xff] %v1625
    %1634 = vst [vmem:[%s8 + $0x48] sm:$0xff] %v1626
    %1635 = vst [vmem:[%s8 + $0x70] sm:$0xff] %v1627
    %1636 = vst [vmem:[%s8 + $0x98] sm:$0xff] %v1628
    %1637 = vst [vmem:[%s8 + $0xc0] sm:$0xff] %v1629
    %1638 = vst [vmem:[%s8 + $0xe8] sm:$0xff] %v1630
    %1639 = vst [vmem:[%s8 + $0x110] sm:$0xff] %v1631
    %1640 = vst [vmem:[%s8 + $0x138] sm:$0xff] %v1632
    // Predicated region
    $region62: #{gin_forward_packed.1} parent=1 // pred_check
      _
    $region63: #{gin_forward_packed.1} parent=1 // pred_check_branch
      %1642 = sbr.rel (0) target = $region65
    $region64: #{gin_forward_packed.1} parent=1 // pred_region
      _
    $region65: #{gin_forward_packed.1} parent=1 // pred_fallthru
      _
    // Predicated region
    $region66: #{gin_forward_packed.1} parent=1 // pred_check
      _
    $region67: #{gin_forward_packed.1} parent=1 // pred_check_branch
      %1644 = sbr.rel (0) target = $region69
    $region68: #{gin_forward_packed.1} parent=1 // pred_region
      _
    $region69: #{gin_forward_packed.1} parent=1 // pred_fallthru
      _
    %1645 = vsyncpa [#allocation3], 1
    %1646 = vsyncpa [#allocation5], 1
    %1647 = vsyncpa [#allocation8], 1
    %1648 = vsyncpa [#allocation11], 1

</llo_original>
